<compile_context>
chip_gen: v5e
topology: v5e:2x2
jax: 0.10.0
libtpu: 0.0.40
codegen_flags: <defaults>
</compile_context>

<pallas_src>
import jax
import jax.numpy as jnp
from jax.experimental import pallas as pl
from jax.experimental.pallas import tpu as pltpu


WEIGHT_NAMES = ("w_ne1", "w_ne2", "w_g", "w_sg", "w_cx", "w_d1")


def _sg_scoring_kernel(
    # scalar prefetch (SMEM)
    sg_idx_ref,                      # (bs, k_sg) int32
    # tiled / resident inputs (VMEM)
    x_ref,                           # (TB, n, input_dim) bf16   -- batch tile
    meta_ref,                        # (TB, meta_dim) f32        -- batch tile
    w_ne1_ref, w_ne2_ref, w_g_ref,   # bf16 weights, VMEM-resident
    w_sg_ref, w_cx_ref, w_d1_ref,    # fused split-K weights, bf16
    bias_ref,                        # (8, 128) f32 packed biases + w_d2 row
    # outputs (VMEM, per batch tile)
    scores_ref,                      # (TB, 128) f32 (lane-padded; col 0 = score)
    node_emb_ref,                    # (TB, n, D) f32
    graph_emb_ref,                   # (TB, D) f32
):
    step = pl.program_id(0)
    TB, n, d_in = x_ref.shape
    D = w_ne1_ref.shape[1]
    k_sg = sg_idx_ref.shape[1]

    # packed bias rows (static slices of the resident (8,128) pack)
    b_ne1 = bias_ref[0:1, :]
    b_ne2 = bias_ref[1:2, :]
    b_g   = bias_ref[2:3, :]
    b_sg  = bias_ref[3:4, :]
    b_cx  = bias_ref[4:5, :]
    b_d1  = bias_ref[5:6, :]
    b_d2  = bias_ref[6:7, :]         # scalar bias broadcast across lanes
    w_d2  = bias_ref[7:8, :]         # final projection as a lane vector

    # ---------------- NodeEncoder: per-node 2-layer MLP (bf16 MXU, f32 acc) ---
    x2d = x_ref[...].reshape(TB * n, d_in)                    # bf16, lane-minor
    h = jnp.maximum(
        jnp.dot(x2d, w_ne1_ref[...], preferred_element_type=jnp.float32) + b_ne1,
        0.0)
    node_emb2d = (jnp.dot(h.astype(jnp.bfloat16), w_ne2_ref[...],
                          preferred_element_type=jnp.float32) + b_ne2)
    node_emb = node_emb2d.reshape(TB, n, D)                   # f32
    node_emb_ref[...] = node_emb

    # graph embedding: mean over nodes, then linear
    g_pool = jnp.mean(node_emb, axis=1)                       # (TB, D)
    graph_emb = (jnp.dot(g_pool.astype(jnp.bfloat16), w_g_ref[...],
                         preferred_element_type=jnp.float32) + b_g)
    graph_emb_ref[...] = graph_emb

    # ---------------- SGEncoder: subgraph gather + mean -----------------------
    # sg_node_idx is in SMEM via scalar prefetch; gather k_sg rows of the
    # freshly written node_emb tile (dynamic sublane loads) and mean them.
    # Duplicate indices behave exactly like gather-then-mean.
    inv_k = 1.0 / float(k_sg)
    pooled = []
    for b in range(TB):                       # static unroll (TB, k_sg small)
        acc = jnp.zeros((1, D), jnp.float32)
        for k in range(k_sg):
            idx = sg_idx_ref[step * TB + b, k]
            acc = acc + node_emb_ref[b, pl.ds(idx, 1), :]
        pooled.append(acc * inv_k)
    sg_pool = jnp.concatenate(pooled, axis=0)                 # (TB, D) f32

    # fused split-K matmuls: concat([a, b], lane) @ W_fused
    sg_in = jnp.concatenate(
        [sg_pool.astype(jnp.bfloat16), meta_ref[...].astype(jnp.bfloat16)],
        axis=-1)
    sg_emb = jnp.maximum(
        jnp.dot(sg_in, w_sg_ref[...], preferred_element_type=jnp.float32) + b_sg,
        0.0)
    cx_in = jnp.concatenate(
        [graph_emb.astype(jnp.bfloat16), sg_pool.astype(jnp.bfloat16)], axis=-1)
    ctxt_emb = jnp.maximum(
        jnp.dot(cx_in, w_cx_ref[...], preferred_element_type=jnp.float32) + b_cx,
        0.0)

    # ---------------- Decoder --------------------------------------------------
    d_in2 = jnp.concatenate(
        [sg_emb.astype(jnp.bfloat16), ctxt_emb.astype(jnp.bfloat16)], axis=-1)
    hd = jnp.maximum(
        jnp.dot(d_in2, w_d1_ref[...], preferred_element_type=jnp.float32) + b_d1,
        0.0)
    # final N=1 projection on the VPU/XLU (keeps the MXU out of an N=1 matmul);
    # lane-padded, unmasked store — wrapper slices column 0.
    score = jnp.sum(hd * w_d2, axis=-1, keepdims=True)        # (TB, 1)
    scores_ref[...] = jnp.broadcast_to(score, scores_ref.shape) + b_d2


def init_params(key, input_dim, meta_dim, emb_dim, dec_hidden):
    """Deterministic synthetic parameter init; split-K weights fused at init."""
    assert emb_dim == 128 and dec_hidden == 128, "bias pack rows are lane width 128"

    def w(k, shape, scale=0.1):
        return scale * jax.random.normal(k, shape, dtype=jnp.float32)

    keys = jax.random.split(key, 14)
    params = {
        "w_ne1": w(keys[0], (input_dim, emb_dim)),
        "w_ne2": w(keys[1], (emb_dim, emb_dim)),
        "w_g":   w(keys[2], (emb_dim, emb_dim)),
        # fused K-concat weights: [sg_pool; meta], [graph_emb; sg_pool], [sg_emb; ctxt_emb]
        "w_sg":  w(keys[3], (emb_dim + meta_dim, emb_dim)),
        "w_cx":  w(keys[4], (2 * emb_dim, emb_dim)),
        "w_d1":  w(keys[5], (2 * emb_dim, dec_hidden)),
    }
    b_ne1 = w(keys[6], (emb_dim,));  b_ne2 = w(keys[7], (emb_dim,))
    b_g   = w(keys[8], (emb_dim,));  b_sg  = w(keys[9], (emb_dim,))
    b_cx  = w(keys[10], (emb_dim,)); b_d1  = w(keys[11], (dec_hidden,))
    w_d2  = w(keys[12], (dec_hidden,))
    b_d2  = w(keys[13], (1,))[0]
    # Pack all small per-feature vectors into one (8, 128) array: fewer DMAs.
    params["bias_pack"] = jnp.stack(
        [b_ne1, b_ne2, b_g, b_sg, b_cx, b_d1,
         jnp.full((emb_dim,), b_d2, jnp.float32), w_d2], axis=0)
    return params


def sg_scoring_forward(node_features, sg_node_idx, sg_meta_features, params,
                       *, batch_tile=8, vmem_limit_bytes=32 * 1024 * 1024):
    bs, n, input_dim = node_features.shape
    meta_dim = sg_meta_features.shape[1]
    emb_dim = params["w_ne1"].shape[1]
    TB = batch_tile
    assert TB % 8 == 0 and bs % TB == 0, "batch tile must be a multiple of 8 dividing bs"

    # bf16 activations/weights for the MXU (f32 accumulation inside the kernel).
    x = node_features.astype(jnp.bfloat16)
    meta = sg_meta_features.astype(jnp.float32)
    weights = [params[name].astype(jnp.bfloat16) for name in WEIGHT_NAMES]
    bias_pack = params["bias_pack"].astype(jnp.float32)
    sg_idx = sg_node_idx.astype(jnp.int32)

    const2 = lambda i, idx_ref: (0, 0)          # weights stay VMEM-resident
    grid_spec = pltpu.PrefetchScalarGridSpec(
        num_scalar_prefetch=1,                  # sg_node_idx -> SMEM
        grid=(bs // TB,),
        in_specs=(
            [pl.BlockSpec((TB, n, input_dim), lambda i, idx_ref: (i, 0, 0)),
             pl.BlockSpec((TB, meta_dim), lambda i, idx_ref: (i, 0))]
            + [pl.BlockSpec(wt.shape, const2) for wt in weights]
            + [pl.BlockSpec(bias_pack.shape, const2)]
        ),
        out_specs=(
            pl.BlockSpec((TB, 128), lambda i, idx_ref: (i, 0)),          # scores (padded)
            pl.BlockSpec((TB, n, emb_dim), lambda i, idx_ref: (i, 0, 0)),  # node_emb
            pl.BlockSpec((TB, emb_dim), lambda i, idx_ref: (i, 0)),       # graph_emb
        ),
    )
    out_shape = (
        jax.ShapeDtypeStruct((bs, 128), jnp.float32),
        jax.ShapeDtypeStruct((bs, n, emb_dim), jnp.float32),
        jax.ShapeDtypeStruct((bs, emb_dim), jnp.float32),
    )
    scores_pad, node_emb, graph_emb = pl.pallas_call(
        _sg_scoring_kernel,
        grid_spec=grid_spec,
        out_shape=out_shape,
        compiler_params=pltpu.CompilerParams(
            dimension_semantics=("parallel",),     # shards batch tiles on v7x's 2 TCs
            vmem_limit_bytes=vmem_limit_bytes),    # explicit (v5e default is 16 MiB)
    )(sg_idx, x, meta, *weights, bias_pack)
    return scores_pad[:, :1], node_emb, graph_emb


if __name__ == "__main__":
    # Small, lane-aligned shapes (feature dims padded to 128 per perf review).
    bs, n, input_dim = 16, 64, 128
    k_sg, meta_dim = 4, 128
    emb_dim, dec_hidden = 128, 128

    key = jax.random.PRNGKey(0)
    kx, ki, km, kp = jax.random.split(key, 4)
    node_features = jax.random.normal(kx, (bs, n, input_dim), dtype=jnp.float32)
    sg_node_idx = jax.random.randint(ki, (bs, k_sg), 0, n, dtype=jnp.int32)
    sg_meta_features = jax.random.normal(km, (bs, meta_dim), dtype=jnp.float32)

    params = init_params(kp, input_dim, meta_dim, emb_dim, dec_hidden)

    scores, node_emb, graph_emb = sg_scoring_forward(
        node_features, sg_node_idx, sg_meta_features, params, batch_tile=8)
    jax.block_until_ready((scores, node_emb, graph_emb))

    assert scores.shape == (bs, 1)
    assert node_emb.shape == (bs, n, emb_dim)
    assert graph_emb.shape == (bs, emb_dim)
    assert bool(jnp.all(jnp.isfinite(scores)))
    assert bool(jnp.all(jnp.isfinite(node_emb)))
    assert bool(jnp.all(jnp.isfinite(graph_emb)))
    print("KERNEL_OK")
</pallas_src>

<mosaic_0001>
module attributes {stable_mosaic.version = 11 : i64} {
  func.func @_sg_scoring_kernel(%arg0: i32, %arg1: memref<16x4xi32, #tpu.memory_space<smem>>, %arg2: memref<8x64x128xbf16, #tpu.memory_space<vmem>>, %arg3: memref<8x128xf32, #tpu.memory_space<vmem>>, %arg4: memref<128x128xbf16, #tpu.memory_space<vmem>>, %arg5: memref<128x128xbf16, #tpu.memory_space<vmem>>, %arg6: memref<128x128xbf16, #tpu.memory_space<vmem>>, %arg7: memref<256x128xbf16, #tpu.memory_space<vmem>>, %arg8: memref<256x128xbf16, #tpu.memory_space<vmem>>, %arg9: memref<256x128xbf16, #tpu.memory_space<vmem>>, %arg10: memref<8x128xf32, #tpu.memory_space<vmem>>, %arg11: memref<8x128xf32, #tpu.memory_space<vmem>>, %arg12: memref<8x64x128xf32, #tpu.memory_space<vmem>>, %arg13: memref<8x128xf32, #tpu.memory_space<vmem>>) attributes {dimension_semantics = [#tpu.dimension_semantics<parallel>], iteration_bounds = array<i64: 2>, scalar_prefetch = 1 : i64, scratch_operands = 0 : i64, tpu.core_type = #tpu.core_type<tc>, window_params = [{transform_indices = @transform_0, window_bounds = array<i64: 8, 64, 128>}, {transform_indices = @transform_1, window_bounds = array<i64: 8, 128>}, {pipeline_mode = #tpu.pipeline_mode<synchronous>, transform_indices = @transform_2, window_bounds = array<i64: 128, 128>}, {pipeline_mode = #tpu.pipeline_mode<synchronous>, transform_indices = @transform_3, window_bounds = array<i64: 128, 128>}, {pipeline_mode = #tpu.pipeline_mode<synchronous>, transform_indices = @transform_4, window_bounds = array<i64: 128, 128>}, {pipeline_mode = #tpu.pipeline_mode<synchronous>, transform_indices = @transform_5, window_bounds = array<i64: 256, 128>}, {pipeline_mode = #tpu.pipeline_mode<synchronous>, transform_indices = @transform_6, window_bounds = array<i64: 256, 128>}, {pipeline_mode = #tpu.pipeline_mode<synchronous>, transform_indices = @transform_7, window_bounds = array<i64: 256, 128>}, {pipeline_mode = #tpu.pipeline_mode<synchronous>, transform_indices = @transform_8, window_bounds = array<i64: 8, 128>}, {transform_indices = @transform_9, window_bounds = array<i64: 8, 128>}, {transform_indices = @transform_10, window_bounds = array<i64: 8, 64, 128>}, {transform_indices = @transform_11, window_bounds = array<i64: 8, 128>}]} {
    %c0 = arith.constant 0 : index
    %c0_0 = arith.constant 0 : index
    %0 = vector.load %arg10[%c0, %c0_0] : memref<8x128xf32, #tpu.memory_space<vmem>>, vector<1x128xf32>
    %c1 = arith.constant 1 : index
    %c0_1 = arith.constant 0 : index
    %1 = vector.load %arg10[%c1, %c0_1] : memref<8x128xf32, #tpu.memory_space<vmem>>, vector<1x128xf32>
    %c2 = arith.constant 2 : index
    %c0_2 = arith.constant 0 : index
    %2 = vector.load %arg10[%c2, %c0_2] : memref<8x128xf32, #tpu.memory_space<vmem>>, vector<1x128xf32>
    %c3 = arith.constant 3 : index
    %c0_3 = arith.constant 0 : index
    %3 = vector.load %arg10[%c3, %c0_3] : memref<8x128xf32, #tpu.memory_space<vmem>>, vector<1x128xf32>
    %c4 = arith.constant 4 : index
    %c0_4 = arith.constant 0 : index
    %4 = vector.load %arg10[%c4, %c0_4] : memref<8x128xf32, #tpu.memory_space<vmem>>, vector<1x128xf32>
    %c5 = arith.constant 5 : index
    %c0_5 = arith.constant 0 : index
    %5 = vector.load %arg10[%c5, %c0_5] : memref<8x128xf32, #tpu.memory_space<vmem>>, vector<1x128xf32>
    %c6 = arith.constant 6 : index
    %c0_6 = arith.constant 0 : index
    %6 = vector.load %arg10[%c6, %c0_6] : memref<8x128xf32, #tpu.memory_space<vmem>>, vector<1x128xf32>
    %c7 = arith.constant 7 : index
    %c0_7 = arith.constant 0 : index
    %7 = vector.load %arg10[%c7, %c0_7] : memref<8x128xf32, #tpu.memory_space<vmem>>, vector<1x128xf32>
    %c0_8 = arith.constant 0 : index
    %c0_9 = arith.constant 0 : index
    %c0_10 = arith.constant 0 : index
    %8 = vector.load %arg2[%c0_8, %c0_9, %c0_10] : memref<8x64x128xbf16, #tpu.memory_space<vmem>>, vector<8x64x128xbf16>
    %9 = vector.shape_cast %8 : vector<8x64x128xbf16> to vector<512x128xbf16>
    %c0_11 = arith.constant 0 : index
    %c0_12 = arith.constant 0 : index
    %10 = vector.load %arg4[%c0_11, %c0_12] : memref<128x128xbf16, #tpu.memory_space<vmem>>, vector<128x128xbf16>
    %cst = arith.constant dense<0.000000e+00> : vector<512x128xf32>
    %11 = tpu.matmul %9, %10, %cst {dimension_numbers = #tpu.dot_dimension_numbers<[1], [0], [0], [1], [0, 0, 1, 1], [], []>} : vector<512x128xbf16>, vector<128x128xbf16>, vector<512x128xf32> -> vector<512x128xf32>
    %12 = vector.broadcast %0 : vector<1x128xf32> to vector<512x128xf32>
    %13 = arith.addf %11, %12 : vector<512x128xf32>
    %cst_13 = arith.constant 0.000000e+00 : f32
    %14 = vector.broadcast %cst_13 : f32 to vector<512x128xf32>
    %15 = arith.maximumf %13, %14 : vector<512x128xf32>
    %16 = arith.truncf %15 : vector<512x128xf32> to vector<512x128xbf16>
    %c0_14 = arith.constant 0 : index
    %c0_15 = arith.constant 0 : index
    %17 = vector.load %arg5[%c0_14, %c0_15] : memref<128x128xbf16, #tpu.memory_space<vmem>>, vector<128x128xbf16>
    %cst_16 = arith.constant dense<0.000000e+00> : vector<512x128xf32>
    %18 = tpu.matmul %16, %17, %cst_16 {dimension_numbers = #tpu.dot_dimension_numbers<[1], [0], [0], [1], [0, 0, 1, 1], [], []>} : vector<512x128xbf16>, vector<128x128xbf16>, vector<512x128xf32> -> vector<512x128xf32>
    %19 = vector.broadcast %1 : vector<1x128xf32> to vector<512x128xf32>
    %20 = arith.addf %18, %19 : vector<512x128xf32>
    %21 = vector.shape_cast %20 : vector<512x128xf32> to vector<8x64x128xf32>
    %c0_17 = arith.constant 0 : index
    %c0_18 = arith.constant 0 : index
    %c0_19 = arith.constant 0 : index
    %22 = vector.load %arg12[%c0_17, %c0_18, %c0_19] : memref<8x64x128xf32, #tpu.memory_space<vmem>>, vector<8x64x128xf32>
    tpu.vector_store %arg12[%c0_17, %c0_18, %c0_19], %21 {strides = array<i32>} : memref<8x64x128xf32, #tpu.memory_space<vmem>>, vector<8x64x128xf32>,
    %cst_20 = arith.constant dense<0.000000e+00> : vector<8x128xf32>
    %23 = vector.multi_reduction <add>, %21, %cst_20 [1] : vector<8x64x128xf32> to vector<8x128xf32>
    %cst_21 = arith.constant 6.400000e+01 : f32
    %24 = vector.broadcast %cst_21 : f32 to vector<8x128xf32>
    %25 = arith.divf %23, %24 : vector<8x128xf32>
    %26 = arith.truncf %25 : vector<8x128xf32> to vector<8x128xbf16>
    %c0_22 = arith.constant 0 : index
    %c0_23 = arith.constant 0 : index
    %27 = vector.load %arg6[%c0_22, %c0_23] : memref<128x128xbf16, #tpu.memory_space<vmem>>, vector<128x128xbf16>
    %cst_24 = arith.constant dense<0.000000e+00> : vector<8x128xf32>
    %28 = tpu.matmul %26, %27, %cst_24 {dimension_numbers = #tpu.dot_dimension_numbers<[1], [0], [0], [1], [0, 0, 1, 1], [], []>} : vector<8x128xbf16>, vector<128x128xbf16>, vector<8x128xf32> -> vector<8x128xf32>
    %29 = vector.broadcast %2 : vector<1x128xf32> to vector<8x128xf32>
    %30 = arith.addf %28, %29 : vector<8x128xf32>
    %c0_25 = arith.constant 0 : index
    %c0_26 = arith.constant 0 : index
    %31 = vector.load %arg13[%c0_25, %c0_26] : memref<8x128xf32, #tpu.memory_space<vmem>>, vector<8x128xf32>
    tpu.vector_store %arg13[%c0_25, %c0_26], %30 {strides = array<i32>} : memref<8x128xf32, #tpu.memory_space<vmem>>, vector<8x128xf32>,
    %cst_27 = arith.constant 0.000000e+00 : f32
    %32 = vector.broadcast %cst_27 : f32 to vector<1x128xf32>
    %c8_i32 = arith.constant 8 : i32
    %33 = arith.muli %arg0, %c8_i32 : i32
    %c0_i32 = arith.constant 0 : i32
    %34 = arith.addi %33, %c0_i32 : i32
    %35 = arith.index_cast %34 : i32 to index
    %c0_28 = arith.constant 0 : index
    %36 = memref.load %arg1[%35, %c0_28] : memref<16x4xi32, #tpu.memory_space<smem>>
    %c0_29 = arith.constant 0 : index
    %37 = arith.index_cast %36 : i32 to index
    %c0_30 = arith.constant 0 : index
    %38 = vector.load %arg12[%c0_29, %37, %c0_30] : memref<8x64x128xf32, #tpu.memory_space<vmem>>, vector<1x1x128xf32>
    %39 = vector.shape_cast %38 : vector<1x1x128xf32> to vector<1x128xf32>
    %40 = arith.addf %32, %39 : vector<1x128xf32>
    %c8_i32_31 = arith.constant 8 : i32
    %41 = arith.muli %arg0, %c8_i32_31 : i32
    %c0_i32_32 = arith.constant 0 : i32
    %42 = arith.addi %41, %c0_i32_32 : i32
    %43 = arith.index_cast %42 : i32 to index
    %c1_33 = arith.constant 1 : index
    %44 = memref.load %arg1[%43, %c1_33] : memref<16x4xi32, #tpu.memory_space<smem>>
    %c0_34 = arith.constant 0 : index
    %45 = arith.index_cast %44 : i32 to index
    %c0_35 = arith.constant 0 : index
    %46 = vector.load %arg12[%c0_34, %45, %c0_35] : memref<8x64x128xf32, #tpu.memory_space<vmem>>, vector<1x1x128xf32>
    %47 = vector.shape_cast %46 : vector<1x1x128xf32> to vector<1x128xf32>
    %48 = arith.addf %40, %47 : vector<1x128xf32>
    %c8_i32_36 = arith.constant 8 : i32
    %49 = arith.muli %arg0, %c8_i32_36 : i32
    %c0_i32_37 = arith.constant 0 : i32
    %50 = arith.addi %49, %c0_i32_37 : i32
    %51 = arith.index_cast %50 : i32 to index
    %c2_38 = arith.constant 2 : index
    %52 = memref.load %arg1[%51, %c2_38] : memref<16x4xi32, #tpu.memory_space<smem>>
    %c0_39 = arith.constant 0 : index
    %53 = arith.index_cast %52 : i32 to index
    %c0_40 = arith.constant 0 : index
    %54 = vector.load %arg12[%c0_39, %53, %c0_40] : memref<8x64x128xf32, #tpu.memory_space<vmem>>, vector<1x1x128xf32>
    %55 = vector.shape_cast %54 : vector<1x1x128xf32> to vector<1x128xf32>
    %56 = arith.addf %48, %55 : vector<1x128xf32>
    %c8_i32_41 = arith.constant 8 : i32
    %57 = arith.muli %arg0, %c8_i32_41 : i32
    %c0_i32_42 = arith.constant 0 : i32
    %58 = arith.addi %57, %c0_i32_42 : i32
    %59 = arith.index_cast %58 : i32 to index
    %c3_43 = arith.constant 3 : index
    %60 = memref.load %arg1[%59, %c3_43] : memref<16x4xi32, #tpu.memory_space<smem>>
    %c0_44 = arith.constant 0 : index
    %61 = arith.index_cast %60 : i32 to index
    %c0_45 = arith.constant 0 : index
    %62 = vector.load %arg12[%c0_44, %61, %c0_45] : memref<8x64x128xf32, #tpu.memory_space<vmem>>, vector<1x1x128xf32>
    %63 = vector.shape_cast %62 : vector<1x1x128xf32> to vector<1x128xf32>
    %64 = arith.addf %56, %63 : vector<1x128xf32>
    %cst_46 = arith.constant 2.500000e-01 : f32
    %65 = vector.broadcast %cst_46 : f32 to vector<1x128xf32>
    %66 = arith.mulf %64, %65 : vector<1x128xf32>
    %cst_47 = arith.constant 0.000000e+00 : f32
    %67 = vector.broadcast %cst_47 : f32 to vector<1x128xf32>
    %c8_i32_48 = arith.constant 8 : i32
    %68 = arith.muli %arg0, %c8_i32_48 : i32
    %c1_i32 = arith.constant 1 : i32
    %69 = arith.addi %68, %c1_i32 : i32
    %70 = arith.index_cast %69 : i32 to index
    %c0_49 = arith.constant 0 : index
    %71 = memref.load %arg1[%70, %c0_49] : memref<16x4xi32, #tpu.memory_space<smem>>
    %c1_50 = arith.constant 1 : index
    %72 = arith.index_cast %71 : i32 to index
    %c0_51 = arith.constant 0 : index
    %73 = vector.load %arg12[%c1_50, %72, %c0_51] : memref<8x64x128xf32, #tpu.memory_space<vmem>>, vector<1x1x128xf32>
    %74 = vector.shape_cast %73 : vector<1x1x128xf32> to vector<1x128xf32>
    %75 = arith.addf %67, %74 : vector<1x128xf32>
    %c8_i32_52 = arith.constant 8 : i32
    %76 = arith.muli %arg0, %c8_i32_52 : i32
    %c1_i32_53 = arith.constant 1 : i32
    %77 = arith.addi %76, %c1_i32_53 : i32
    %78 = arith.index_cast %77 : i32 to index
    %c1_54 = arith.constant 1 : index
    %79 = memref.load %arg1[%78, %c1_54] : memref<16x4xi32, #tpu.memory_space<smem>>
    %c1_55 = arith.constant 1 : index
    %80 = arith.index_cast %79 : i32 to index
    %c0_56 = arith.constant 0 : index
    %81 = vector.load %arg12[%c1_55, %80, %c0_56] : memref<8x64x128xf32, #tpu.memory_space<vmem>>, vector<1x1x128xf32>
    %82 = vector.shape_cast %81 : vector<1x1x128xf32> to vector<1x128xf32>
    %83 = arith.addf %75, %82 : vector<1x128xf32>
    %c8_i32_57 = arith.constant 8 : i32
    %84 = arith.muli %arg0, %c8_i32_57 : i32
    %c1_i32_58 = arith.constant 1 : i32
    %85 = arith.addi %84, %c1_i32_58 : i32
    %86 = arith.index_cast %85 : i32 to index
    %c2_59 = arith.constant 2 : index
    %87 = memref.load %arg1[%86, %c2_59] : memref<16x4xi32, #tpu.memory_space<smem>>
    %c1_60 = arith.constant 1 : index
    %88 = arith.index_cast %87 : i32 to index
    %c0_61 = arith.constant 0 : index
    %89 = vector.load %arg12[%c1_60, %88, %c0_61] : memref<8x64x128xf32, #tpu.memory_space<vmem>>, vector<1x1x128xf32>
    %90 = vector.shape_cast %89 : vector<1x1x128xf32> to vector<1x128xf32>
    %91 = arith.addf %83, %90 : vector<1x128xf32>
    %c8_i32_62 = arith.constant 8 : i32
    %92 = arith.muli %arg0, %c8_i32_62 : i32
    %c1_i32_63 = arith.constant 1 : i32
    %93 = arith.addi %92, %c1_i32_63 : i32
    %94 = arith.index_cast %93 : i32 to index
    %c3_64 = arith.constant 3 : index
    %95 = memref.load %arg1[%94, %c3_64] : memref<16x4xi32, #tpu.memory_space<smem>>
    %c1_65 = arith.constant 1 : index
    %96 = arith.index_cast %95 : i32 to index
    %c0_66 = arith.constant 0 : index
    %97 = vector.load %arg12[%c1_65, %96, %c0_66] : memref<8x64x128xf32, #tpu.memory_space<vmem>>, vector<1x1x128xf32>
    %98 = vector.shape_cast %97 : vector<1x1x128xf32> to vector<1x128xf32>
    %99 = arith.addf %91, %98 : vector<1x128xf32>
    %cst_67 = arith.constant 2.500000e-01 : f32
    %100 = vector.broadcast %cst_67 : f32 to vector<1x128xf32>
    %101 = arith.mulf %99, %100 : vector<1x128xf32>
    %cst_68 = arith.constant 0.000000e+00 : f32
    %102 = vector.broadcast %cst_68 : f32 to vector<1x128xf32>
    %c8_i32_69 = arith.constant 8 : i32
    %103 = arith.muli %arg0, %c8_i32_69 : i32
    %c2_i32 = arith.constant 2 : i32
    %104 = arith.addi %103, %c2_i32 : i32
    %105 = arith.index_cast %104 : i32 to index
    %c0_70 = arith.constant 0 : index
    %106 = memref.load %arg1[%105, %c0_70] : memref<16x4xi32, #tpu.memory_space<smem>>
    %c2_71 = arith.constant 2 : index
    %107 = arith.index_cast %106 : i32 to index
    %c0_72 = arith.constant 0 : index
    %108 = vector.load %arg12[%c2_71, %107, %c0_72] : memref<8x64x128xf32, #tpu.memory_space<vmem>>, vector<1x1x128xf32>
    %109 = vector.shape_cast %108 : vector<1x1x128xf32> to vector<1x128xf32>
    %110 = arith.addf %102, %109 : vector<1x128xf32>
    %c8_i32_73 = arith.constant 8 : i32
    %111 = arith.muli %arg0, %c8_i32_73 : i32
    %c2_i32_74 = arith.constant 2 : i32
    %112 = arith.addi %111, %c2_i32_74 : i32
    %113 = arith.index_cast %112 : i32 to index
    %c1_75 = arith.constant 1 : index
    %114 = memref.load %arg1[%113, %c1_75] : memref<16x4xi32, #tpu.memory_space<smem>>
    %c2_76 = arith.constant 2 : index
    %115 = arith.index_cast %114 : i32 to index
    %c0_77 = arith.constant 0 : index
    %116 = vector.load %arg12[%c2_76, %115, %c0_77] : memref<8x64x128xf32, #tpu.memory_space<vmem>>, vector<1x1x128xf32>
    %117 = vector.shape_cast %116 : vector<1x1x128xf32> to vector<1x128xf32>
    %118 = arith.addf %110, %117 : vector<1x128xf32>
    %c8_i32_78 = arith.constant 8 : i32
    %119 = arith.muli %arg0, %c8_i32_78 : i32
    %c2_i32_79 = arith.constant 2 : i32
    %120 = arith.addi %119, %c2_i32_79 : i32
    %121 = arith.index_cast %120 : i32 to index
    %c2_80 = arith.constant 2 : index
    %122 = memref.load %arg1[%121, %c2_80] : memref<16x4xi32, #tpu.memory_space<smem>>
    %c2_81 = arith.constant 2 : index
    %123 = arith.index_cast %122 : i32 to index
    %c0_82 = arith.constant 0 : index
    %124 = vector.load %arg12[%c2_81, %123, %c0_82] : memref<8x64x128xf32, #tpu.memory_space<vmem>>, vector<1x1x128xf32>
    %125 = vector.shape_cast %124 : vector<1x1x128xf32> to vector<1x128xf32>
    %126 = arith.addf %118, %125 : vector<1x128xf32>
    %c8_i32_83 = arith.constant 8 : i32
    %127 = arith.muli %arg0, %c8_i32_83 : i32
    %c2_i32_84 = arith.constant 2 : i32
    %128 = arith.addi %127, %c2_i32_84 : i32
    %129 = arith.index_cast %128 : i32 to index
    %c3_85 = arith.constant 3 : index
    %130 = memref.load %arg1[%129, %c3_85] : memref<16x4xi32, #tpu.memory_space<smem>>
    %c2_86 = arith.constant 2 : index
    %131 = arith.index_cast %130 : i32 to index
    %c0_87 = arith.constant 0 : index
    %132 = vector.load %arg12[%c2_86, %131, %c0_87] : memref<8x64x128xf32, #tpu.memory_space<vmem>>, vector<1x1x128xf32>
    %133 = vector.shape_cast %132 : vector<1x1x128xf32> to vector<1x128xf32>
    %134 = arith.addf %126, %133 : vector<1x128xf32>
    %cst_88 = arith.constant 2.500000e-01 : f32
    %135 = vector.broadcast %cst_88 : f32 to vector<1x128xf32>
    %136 = arith.mulf %134, %135 : vector<1x128xf32>
    %cst_89 = arith.constant 0.000000e+00 : f32
    %137 = vector.broadcast %cst_89 : f32 to vector<1x128xf32>
    %c8_i32_90 = arith.constant 8 : i32
    %138 = arith.muli %arg0, %c8_i32_90 : i32
    %c3_i32 = arith.constant 3 : i32
    %139 = arith.addi %138, %c3_i32 : i32
    %140 = arith.index_cast %139 : i32 to index
    %c0_91 = arith.constant 0 : index
    %141 = memref.load %arg1[%140, %c0_91] : memref<16x4xi32, #tpu.memory_space<smem>>
    %c3_92 = arith.constant 3 : index
    %142 = arith.index_cast %141 : i32 to index
    %c0_93 = arith.constant 0 : index
    %143 = vector.load %arg12[%c3_92, %142, %c0_93] : memref<8x64x128xf32, #tpu.memory_space<vmem>>, vector<1x1x128xf32>
    %144 = vector.shape_cast %143 : vector<1x1x128xf32> to vector<1x128xf32>
    %145 = arith.addf %137, %144 : vector<1x128xf32>
    %c8_i32_94 = arith.constant 8 : i32
    %146 = arith.muli %arg0, %c8_i32_94 : i32
    %c3_i32_95 = arith.constant 3 : i32
    %147 = arith.addi %146, %c3_i32_95 : i32
    %148 = arith.index_cast %147 : i32 to index
    %c1_96 = arith.constant 1 : index
    %149 = memref.load %arg1[%148, %c1_96] : memref<16x4xi32, #tpu.memory_space<smem>>
    %c3_97 = arith.constant 3 : index
    %150 = arith.index_cast %149 : i32 to index
    %c0_98 = arith.constant 0 : index
    %151 = vector.load %arg12[%c3_97, %150, %c0_98] : memref<8x64x128xf32, #tpu.memory_space<vmem>>, vector<1x1x128xf32>
    %152 = vector.shape_cast %151 : vector<1x1x128xf32> to vector<1x128xf32>
    %153 = arith.addf %145, %152 : vector<1x128xf32>
    %c8_i32_99 = arith.constant 8 : i32
    %154 = arith.muli %arg0, %c8_i32_99 : i32
    %c3_i32_100 = arith.constant 3 : i32
    %155 = arith.addi %154, %c3_i32_100 : i32
    %156 = arith.index_cast %155 : i32 to index
    %c2_101 = arith.constant 2 : index
    %157 = memref.load %arg1[%156, %c2_101] : memref<16x4xi32, #tpu.memory_space<smem>>
    %c3_102 = arith.constant 3 : index
    %158 = arith.index_cast %157 : i32 to index
    %c0_103 = arith.constant 0 : index
    %159 = vector.load %arg12[%c3_102, %158, %c0_103] : memref<8x64x128xf32, #tpu.memory_space<vmem>>, vector<1x1x128xf32>
    %160 = vector.shape_cast %159 : vector<1x1x128xf32> to vector<1x128xf32>
    %161 = arith.addf %153, %160 : vector<1x128xf32>
    %c8_i32_104 = arith.constant 8 : i32
    %162 = arith.muli %arg0, %c8_i32_104 : i32
    %c3_i32_105 = arith.constant 3 : i32
    %163 = arith.addi %162, %c3_i32_105 : i32
    %164 = arith.index_cast %163 : i32 to index
    %c3_106 = arith.constant 3 : index
    %165 = memref.load %arg1[%164, %c3_106] : memref<16x4xi32, #tpu.memory_space<smem>>
    %c3_107 = arith.constant 3 : index
    %166 = arith.index_cast %165 : i32 to index
    %c0_108 = arith.constant 0 : index
    %167 = vector.load %arg12[%c3_107, %166, %c0_108] : memref<8x64x128xf32, #tpu.memory_space<vmem>>, vector<1x1x128xf32>
    %168 = vector.shape_cast %167 : vector<1x1x128xf32> to vector<1x128xf32>
    %169 = arith.addf %161, %168 : vector<1x128xf32>
    %cst_109 = arith.constant 2.500000e-01 : f32
    %170 = vector.broadcast %cst_109 : f32 to vector<1x128xf32>
    %171 = arith.mulf %169, %170 : vector<1x128xf32>
    %cst_110 = arith.constant 0.000000e+00 : f32
    %172 = vector.broadcast %cst_110 : f32 to vector<1x128xf32>
    %c8_i32_111 = arith.constant 8 : i32
    %173 = arith.muli %arg0, %c8_i32_111 : i32
    %c4_i32 = arith.constant 4 : i32
    %174 = arith.addi %173, %c4_i32 : i32
    %175 = arith.index_cast %174 : i32 to index
    %c0_112 = arith.constant 0 : index
    %176 = memref.load %arg1[%175, %c0_112] : memref<16x4xi32, #tpu.memory_space<smem>>
    %c4_113 = arith.constant 4 : index
    %177 = arith.index_cast %176 : i32 to index
    %c0_114 = arith.constant 0 : index
    %178 = vector.load %arg12[%c4_113, %177, %c0_114] : memref<8x64x128xf32, #tpu.memory_space<vmem>>, vector<1x1x128xf32>
    %179 = vector.shape_cast %178 : vector<1x1x128xf32> to vector<1x128xf32>
    %180 = arith.addf %172, %179 : vector<1x128xf32>
    %c8_i32_115 = arith.constant 8 : i32
    %181 = arith.muli %arg0, %c8_i32_115 : i32
    %c4_i32_116 = arith.constant 4 : i32
    %182 = arith.addi %181, %c4_i32_116 : i32
    %183 = arith.index_cast %182 : i32 to index
    %c1_117 = arith.constant 1 : index
    %184 = memref.load %arg1[%183, %c1_117] : memref<16x4xi32, #tpu.memory_space<smem>>
    %c4_118 = arith.constant 4 : index
    %185 = arith.index_cast %184 : i32 to index
    %c0_119 = arith.constant 0 : index
    %186 = vector.load %arg12[%c4_118, %185, %c0_119] : memref<8x64x128xf32, #tpu.memory_space<vmem>>, vector<1x1x128xf32>
    %187 = vector.shape_cast %186 : vector<1x1x128xf32> to vector<1x128xf32>
    %188 = arith.addf %180, %187 : vector<1x128xf32>
    %c8_i32_120 = arith.constant 8 : i32
    %189 = arith.muli %arg0, %c8_i32_120 : i32
    %c4_i32_121 = arith.constant 4 : i32
    %190 = arith.addi %189, %c4_i32_121 : i32
    %191 = arith.index_cast %190 : i32 to index
    %c2_122 = arith.constant 2 : index
    %192 = memref.load %arg1[%191, %c2_122] : memref<16x4xi32, #tpu.memory_space<smem>>
    %c4_123 = arith.constant 4 : index
    %193 = arith.index_cast %192 : i32 to index
    %c0_124 = arith.constant 0 : index
    %194 = vector.load %arg12[%c4_123, %193, %c0_124] : memref<8x64x128xf32, #tpu.memory_space<vmem>>, vector<1x1x128xf32>
    %195 = vector.shape_cast %194 : vector<1x1x128xf32> to vector<1x128xf32>
    %196 = arith.addf %188, %195 : vector<1x128xf32>
    %c8_i32_125 = arith.constant 8 : i32
    %197 = arith.muli %arg0, %c8_i32_125 : i32
    %c4_i32_126 = arith.constant 4 : i32
    %198 = arith.addi %197, %c4_i32_126 : i32
    %199 = arith.index_cast %198 : i32 to index
    %c3_127 = arith.constant 3 : index
    %200 = memref.load %arg1[%199, %c3_127] : memref<16x4xi32, #tpu.memory_space<smem>>
    %c4_128 = arith.constant 4 : index
    %201 = arith.index_cast %200 : i32 to index
    %c0_129 = arith.constant 0 : index
    %202 = vector.load %arg12[%c4_128, %201, %c0_129] : memref<8x64x128xf32, #tpu.memory_space<vmem>>, vector<1x1x128xf32>
    %203 = vector.shape_cast %202 : vector<1x1x128xf32> to vector<1x128xf32>
    %204 = arith.addf %196, %203 : vector<1x128xf32>
    %cst_130 = arith.constant 2.500000e-01 : f32
    %205 = vector.broadcast %cst_130 : f32 to vector<1x128xf32>
    %206 = arith.mulf %204, %205 : vector<1x128xf32>
    %cst_131 = arith.constant 0.000000e+00 : f32
    %207 = vector.broadcast %cst_131 : f32 to vector<1x128xf32>
    %c8_i32_132 = arith.constant 8 : i32
    %208 = arith.muli %arg0, %c8_i32_132 : i32
    %c5_i32 = arith.constant 5 : i32
    %209 = arith.addi %208, %c5_i32 : i32
    %210 = arith.index_cast %209 : i32 to index
    %c0_133 = arith.constant 0 : index
    %211 = memref.load %arg1[%210, %c0_133] : memref<16x4xi32, #tpu.memory_space<smem>>
    %c5_134 = arith.constant 5 : index
    %212 = arith.index_cast %211 : i32 to index
    %c0_135 = arith.constant 0 : index
    %213 = vector.load %arg12[%c5_134, %212, %c0_135] : memref<8x64x128xf32, #tpu.memory_space<vmem>>, vector<1x1x128xf32>
    %214 = vector.shape_cast %213 : vector<1x1x128xf32> to vector<1x128xf32>
    %215 = arith.addf %207, %214 : vector<1x128xf32>
    %c8_i32_136 = arith.constant 8 : i32
    %216 = arith.muli %arg0, %c8_i32_136 : i32
    %c5_i32_137 = arith.constant 5 : i32
    %217 = arith.addi %216, %c5_i32_137 : i32
    %218 = arith.index_cast %217 : i32 to index
    %c1_138 = arith.constant 1 : index
    %219 = memref.load %arg1[%218, %c1_138] : memref<16x4xi32, #tpu.memory_space<smem>>
    %c5_139 = arith.constant 5 : index
    %220 = arith.index_cast %219 : i32 to index
    %c0_140 = arith.constant 0 : index
    %221 = vector.load %arg12[%c5_139, %220, %c0_140] : memref<8x64x128xf32, #tpu.memory_space<vmem>>, vector<1x1x128xf32>
    %222 = vector.shape_cast %221 : vector<1x1x128xf32> to vector<1x128xf32>
    %223 = arith.addf %215, %222 : vector<1x128xf32>
    %c8_i32_141 = arith.constant 8 : i32
    %224 = arith.muli %arg0, %c8_i32_141 : i32
    %c5_i32_142 = arith.constant 5 : i32
    %225 = arith.addi %224, %c5_i32_142 : i32
    %226 = arith.index_cast %225 : i32 to index
    %c2_143 = arith.constant 2 : index
    %227 = memref.load %arg1[%226, %c2_143] : memref<16x4xi32, #tpu.memory_space<smem>>
    %c5_144 = arith.constant 5 : index
    %228 = arith.index_cast %227 : i32 to index
    %c0_145 = arith.constant 0 : index
    %229 = vector.load %arg12[%c5_144, %228, %c0_145] : memref<8x64x128xf32, #tpu.memory_space<vmem>>, vector<1x1x128xf32>
    %230 = vector.shape_cast %229 : vector<1x1x128xf32> to vector<1x128xf32>
    %231 = arith.addf %223, %230 : vector<1x128xf32>
    %c8_i32_146 = arith.constant 8 : i32
    %232 = arith.muli %arg0, %c8_i32_146 : i32
    %c5_i32_147 = arith.constant 5 : i32
    %233 = arith.addi %232, %c5_i32_147 : i32
    %234 = arith.index_cast %233 : i32 to index
    %c3_148 = arith.constant 3 : index
    %235 = memref.load %arg1[%234, %c3_148] : memref<16x4xi32, #tpu.memory_space<smem>>
    %c5_149 = arith.constant 5 : index
    %236 = arith.index_cast %235 : i32 to index
    %c0_150 = arith.constant 0 : index
    %237 = vector.load %arg12[%c5_149, %236, %c0_150] : memref<8x64x128xf32, #tpu.memory_space<vmem>>, vector<1x1x128xf32>
    %238 = vector.shape_cast %237 : vector<1x1x128xf32> to vector<1x128xf32>
    %239 = arith.addf %231, %238 : vector<1x128xf32>
    %cst_151 = arith.constant 2.500000e-01 : f32
    %240 = vector.broadcast %cst_151 : f32 to vector<1x128xf32>
    %241 = arith.mulf %239, %240 : vector<1x128xf32>
    %cst_152 = arith.constant 0.000000e+00 : f32
    %242 = vector.broadcast %cst_152 : f32 to vector<1x128xf32>
    %c8_i32_153 = arith.constant 8 : i32
    %243 = arith.muli %arg0, %c8_i32_153 : i32
    %c6_i32 = arith.constant 6 : i32
    %244 = arith.addi %243, %c6_i32 : i32
    %245 = arith.index_cast %244 : i32 to index
    %c0_154 = arith.constant 0 : index
    %246 = memref.load %arg1[%245, %c0_154] : memref<16x4xi32, #tpu.memory_space<smem>>
    %c6_155 = arith.constant 6 : index
    %247 = arith.index_cast %246 : i32 to index
    %c0_156 = arith.constant 0 : index
    %248 = vector.load %arg12[%c6_155, %247, %c0_156] : memref<8x64x128xf32, #tpu.memory_space<vmem>>, vector<1x1x128xf32>
    %249 = vector.shape_cast %248 : vector<1x1x128xf32> to vector<1x128xf32>
    %250 = arith.addf %242, %249 : vector<1x128xf32>
    %c8_i32_157 = arith.constant 8 : i32
    %251 = arith.muli %arg0, %c8_i32_157 : i32
    %c6_i32_158 = arith.constant 6 : i32
    %252 = arith.addi %251, %c6_i32_158 : i32
    %253 = arith.index_cast %252 : i32 to index
    %c1_159 = arith.constant 1 : index
    %254 = memref.load %arg1[%253, %c1_159] : memref<16x4xi32, #tpu.memory_space<smem>>
    %c6_160 = arith.constant 6 : index
    %255 = arith.index_cast %254 : i32 to index
    %c0_161 = arith.constant 0 : index
    %256 = vector.load %arg12[%c6_160, %255, %c0_161] : memref<8x64x128xf32, #tpu.memory_space<vmem>>, vector<1x1x128xf32>
    %257 = vector.shape_cast %256 : vector<1x1x128xf32> to vector<1x128xf32>
    %258 = arith.addf %250, %257 : vector<1x128xf32>
    %c8_i32_162 = arith.constant 8 : i32
    %259 = arith.muli %arg0, %c8_i32_162 : i32
    %c6_i32_163 = arith.constant 6 : i32
    %260 = arith.addi %259, %c6_i32_163 : i32
    %261 = arith.index_cast %260 : i32 to index
    %c2_164 = arith.constant 2 : index
    %262 = memref.load %arg1[%261, %c2_164] : memref<16x4xi32, #tpu.memory_space<smem>>
    %c6_165 = arith.constant 6 : index
    %263 = arith.index_cast %262 : i32 to index
    %c0_166 = arith.constant 0 : index
    %264 = vector.load %arg12[%c6_165, %263, %c0_166] : memref<8x64x128xf32, #tpu.memory_space<vmem>>, vector<1x1x128xf32>
    %265 = vector.shape_cast %264 : vector<1x1x128xf32> to vector<1x128xf32>
    %266 = arith.addf %258, %265 : vector<1x128xf32>
    %c8_i32_167 = arith.constant 8 : i32
    %267 = arith.muli %arg0, %c8_i32_167 : i32
    %c6_i32_168 = arith.constant 6 : i32
    %268 = arith.addi %267, %c6_i32_168 : i32
    %269 = arith.index_cast %268 : i32 to index
    %c3_169 = arith.constant 3 : index
    %270 = memref.load %arg1[%269, %c3_169] : memref<16x4xi32, #tpu.memory_space<smem>>
    %c6_170 = arith.constant 6 : index
    %271 = arith.index_cast %270 : i32 to index
    %c0_171 = arith.constant 0 : index
    %272 = vector.load %arg12[%c6_170, %271, %c0_171] : memref<8x64x128xf32, #tpu.memory_space<vmem>>, vector<1x1x128xf32>
    %273 = vector.shape_cast %272 : vector<1x1x128xf32> to vector<1x128xf32>
    %274 = arith.addf %266, %273 : vector<1x128xf32>
    %cst_172 = arith.constant 2.500000e-01 : f32
    %275 = vector.broadcast %cst_172 : f32 to vector<1x128xf32>
    %276 = arith.mulf %274, %275 : vector<1x128xf32>
    %cst_173 = arith.constant 0.000000e+00 : f32
    %277 = vector.broadcast %cst_173 : f32 to vector<1x128xf32>
    %c8_i32_174 = arith.constant 8 : i32
    %278 = arith.muli %arg0, %c8_i32_174 : i32
    %c7_i32 = arith.constant 7 : i32
    %279 = arith.addi %278, %c7_i32 : i32
    %280 = arith.index_cast %279 : i32 to index
    %c0_175 = arith.constant 0 : index
    %281 = memref.load %arg1[%280, %c0_175] : memref<16x4xi32, #tpu.memory_space<smem>>
    %c7_176 = arith.constant 7 : index
    %282 = arith.index_cast %281 : i32 to index
    %c0_177 = arith.constant 0 : index
    %283 = vector.load %arg12[%c7_176, %282, %c0_177] : memref<8x64x128xf32, #tpu.memory_space<vmem>>, vector<1x1x128xf32>
    %284 = vector.shape_cast %283 : vector<1x1x128xf32> to vector<1x128xf32>
    %285 = arith.addf %277, %284 : vector<1x128xf32>
    %c8_i32_178 = arith.constant 8 : i32
    %286 = arith.muli %arg0, %c8_i32_178 : i32
    %c7_i32_179 = arith.constant 7 : i32
    %287 = arith.addi %286, %c7_i32_179 : i32
    %288 = arith.index_cast %287 : i32 to index
    %c1_180 = arith.constant 1 : index
    %289 = memref.load %arg1[%288, %c1_180] : memref<16x4xi32, #tpu.memory_space<smem>>
    %c7_181 = arith.constant 7 : index
    %290 = arith.index_cast %289 : i32 to index
    %c0_182 = arith.constant 0 : index
    %291 = vector.load %arg12[%c7_181, %290, %c0_182] : memref<8x64x128xf32, #tpu.memory_space<vmem>>, vector<1x1x128xf32>
    %292 = vector.shape_cast %291 : vector<1x1x128xf32> to vector<1x128xf32>
    %293 = arith.addf %285, %292 : vector<1x128xf32>
    %c8_i32_183 = arith.constant 8 : i32
    %294 = arith.muli %arg0, %c8_i32_183 : i32
    %c7_i32_184 = arith.constant 7 : i32
    %295 = arith.addi %294, %c7_i32_184 : i32
    %296 = arith.index_cast %295 : i32 to index
    %c2_185 = arith.constant 2 : index
    %297 = memref.load %arg1[%296, %c2_185] : memref<16x4xi32, #tpu.memory_space<smem>>
    %c7_186 = arith.constant 7 : index
    %298 = arith.index_cast %297 : i32 to index
    %c0_187 = arith.constant 0 : index
    %299 = vector.load %arg12[%c7_186, %298, %c0_187] : memref<8x64x128xf32, #tpu.memory_space<vmem>>, vector<1x1x128xf32>
    %300 = vector.shape_cast %299 : vector<1x1x128xf32> to vector<1x128xf32>
    %301 = arith.addf %293, %300 : vector<1x128xf32>
    %c8_i32_188 = arith.constant 8 : i32
    %302 = arith.muli %arg0, %c8_i32_188 : i32
    %c7_i32_189 = arith.constant 7 : i32
    %303 = arith.addi %302, %c7_i32_189 : i32
    %304 = arith.index_cast %303 : i32 to index
    %c3_190 = arith.constant 3 : index
    %305 = memref.load %arg1[%304, %c3_190] : memref<16x4xi32, #tpu.memory_space<smem>>
    %c7_191 = arith.constant 7 : index
    %306 = arith.index_cast %305 : i32 to index
    %c0_192 = arith.constant 0 : index
    %307 = vector.load %arg12[%c7_191, %306, %c0_192] : memref<8x64x128xf32, #tpu.memory_space<vmem>>, vector<1x1x128xf32>
    %308 = vector.shape_cast %307 : vector<1x1x128xf32> to vector<1x128xf32>
    %309 = arith.addf %301, %308 : vector<1x128xf32>
    %cst_193 = arith.constant 2.500000e-01 : f32
    %310 = vector.broadcast %cst_193 : f32 to vector<1x128xf32>
    %311 = arith.mulf %309, %310 : vector<1x128xf32>
    %312 = tpu.concatenate %66, %101, %136, %171, %206, %241, %276, %311 in 0 : vector<1x128xf32>, vector<1x128xf32>, vector<1x128xf32>, vector<1x128xf32>, vector<1x128xf32>, vector<1x128xf32>, vector<1x128xf32>, vector<1x128xf32> -> vector<8x128xf32>
    %313 = arith.truncf %312 : vector<8x128xf32> to vector<8x128xbf16>
    %c0_194 = arith.constant 0 : index
    %c0_195 = arith.constant 0 : index
    %314 = vector.load %arg3[%c0_194, %c0_195] : memref<8x128xf32, #tpu.memory_space<vmem>>, vector<8x128xf32>
    %315 = arith.truncf %314 : vector<8x128xf32> to vector<8x128xbf16>
    %316 = tpu.concatenate %313, %315 in 1 : vector<8x128xbf16>, vector<8x128xbf16> -> vector<8x256xbf16>
    %c0_196 = arith.constant 0 : index
    %c0_197 = arith.constant 0 : index
    %317 = vector.load %arg7[%c0_196, %c0_197] : memref<256x128xbf16, #tpu.memory_space<vmem>>, vector<256x128xbf16>
    %cst_198 = arith.constant dense<0.000000e+00> : vector<8x128xf32>
    %318 = tpu.matmul %316, %317, %cst_198 {dimension_numbers = #tpu.dot_dimension_numbers<[1], [0], [0], [1], [0, 0, 1, 1], [], []>} : vector<8x256xbf16>, vector<256x128xbf16>, vector<8x128xf32> -> vector<8x128xf32>
    %319 = vector.broadcast %3 : vector<1x128xf32> to vector<8x128xf32>
    %320 = arith.addf %318, %319 : vector<8x128xf32>
    %cst_199 = arith.constant 0.000000e+00 : f32
    %321 = vector.broadcast %cst_199 : f32 to vector<8x128xf32>
    %322 = arith.maximumf %320, %321 : vector<8x128xf32>
    %323 = arith.truncf %30 : vector<8x128xf32> to vector<8x128xbf16>
    %324 = arith.truncf %312 : vector<8x128xf32> to vector<8x128xbf16>
    %325 = tpu.concatenate %323, %324 in 1 : vector<8x128xbf16>, vector<8x128xbf16> -> vector<8x256xbf16>
    %c0_200 = arith.constant 0 : index
    %c0_201 = arith.constant 0 : index
    %326 = vector.load %arg8[%c0_200, %c0_201] : memref<256x128xbf16, #tpu.memory_space<vmem>>, vector<256x128xbf16>
    %cst_202 = arith.constant dense<0.000000e+00> : vector<8x128xf32>
    %327 = tpu.matmul %325, %326, %cst_202 {dimension_numbers = #tpu.dot_dimension_numbers<[1], [0], [0], [1], [0, 0, 1, 1], [], []>} : vector<8x256xbf16>, vector<256x128xbf16>, vector<8x128xf32> -> vector<8x128xf32>
    %328 = vector.broadcast %4 : vector<1x128xf32> to vector<8x128xf32>
    %329 = arith.addf %327, %328 : vector<8x128xf32>
    %cst_203 = arith.constant 0.000000e+00 : f32
    %330 = vector.broadcast %cst_203 : f32 to vector<8x128xf32>
    %331 = arith.maximumf %329, %330 : vector<8x128xf32>
    %332 = arith.truncf %322 : vector<8x128xf32> to vector<8x128xbf16>
    %333 = arith.truncf %331 : vector<8x128xf32> to vector<8x128xbf16>
    %334 = tpu.concatenate %332, %333 in 1 : vector<8x128xbf16>, vector<8x128xbf16> -> vector<8x256xbf16>
    %c0_204 = arith.constant 0 : index
    %c0_205 = arith.constant 0 : index
    %335 = vector.load %arg9[%c0_204, %c0_205] : memref<256x128xbf16, #tpu.memory_space<vmem>>, vector<256x128xbf16>
    %cst_206 = arith.constant dense<0.000000e+00> : vector<8x128xf32>
    %336 = tpu.matmul %334, %335, %cst_206 {dimension_numbers = #tpu.dot_dimension_numbers<[1], [0], [0], [1], [0, 0, 1, 1], [], []>} : vector<8x256xbf16>, vector<256x128xbf16>, vector<8x128xf32> -> vector<8x128xf32>
    %337 = vector.broadcast %5 : vector<1x128xf32> to vector<8x128xf32>
    %338 = arith.addf %336, %337 : vector<8x128xf32>
    %cst_207 = arith.constant 0.000000e+00 : f32
    %339 = vector.broadcast %cst_207 : f32 to vector<8x128xf32>
    %340 = arith.maximumf %338, %339 : vector<8x128xf32>
    %341 = vector.broadcast %7 : vector<1x128xf32> to vector<8x128xf32>
    %342 = arith.mulf %340, %341 : vector<8x128xf32>
    %cst_208 = arith.constant dense<0.000000e+00> : vector<8xf32>
    %343 = vector.multi_reduction <add>, %342, %cst_208 [1] : vector<8x128xf32> to vector<8xf32>
    %344 = vector.shape_cast %343 : vector<8xf32> to vector<8x1xf32>
    %345 = vector.shape_cast %344 : vector<8x1xf32> to vector<8x1xf32>
    %346 = vector.broadcast %345 : vector<8x1xf32> to vector<8x128xf32>
    %347 = vector.broadcast %6 : vector<1x128xf32> to vector<8x128xf32>
    %348 = arith.addf %346, %347 : vector<8x128xf32>
    %c0_209 = arith.constant 0 : index
    %c0_210 = arith.constant 0 : index
    %349 = vector.load %arg11[%c0_209, %c0_210] : memref<8x128xf32, #tpu.memory_space<vmem>>, vector<8x128xf32>
    tpu.vector_store %arg11[%c0_209, %c0_210], %348 {strides = array<i32>} : memref<8x128xf32, #tpu.memory_space<vmem>>, vector<8x128xf32>,
    return
  }
  func.func @transform_0(%arg0: i32, %arg1: memref<16x4xi32, #tpu.memory_space<smem>>) -> (i32, i32, i32) {
    %c0_i32 = arith.constant 0 : i32
    %c0_i32_0 = arith.constant 0 : i32
    %c0_i32_1 = arith.constant 0 : i32
    return %arg0, %c0_i32, %c0_i32_0 : i32, i32, i32
  }
  func.func @transform_1(%arg0: i32, %arg1: memref<16x4xi32, #tpu.memory_space<smem>>) -> (i32, i32) {
    %c0_i32 = arith.constant 0 : i32
    %c0_i32_0 = arith.constant 0 : i32
    return %arg0, %c0_i32 : i32, i32
  }
  func.func @transform_2(%arg0: i32, %arg1: memref<16x4xi32, #tpu.memory_space<smem>>) -> (i32, i32) {
    %c0_i32 = arith.constant 0 : i32
    %c0_i32_0 = arith.constant 0 : i32
    %c0_i32_1 = arith.constant 0 : i32
    return %c0_i32, %c0_i32_0 : i32, i32
  }
  func.func @transform_3(%arg0: i32, %arg1: memref<16x4xi32, #tpu.memory_space<smem>>) -> (i32, i32) {
    %c0_i32 = arith.constant 0 : i32
    %c0_i32_0 = arith.constant 0 : i32
    %c0_i32_1 = arith.constant 0 : i32
    return %c0_i32, %c0_i32_0 : i32, i32
  }
  func.func @transform_4(%arg0: i32, %arg1: memref<16x4xi32, #tpu.memory_space<smem>>) -> (i32, i32) {
    %c0_i32 = arith.constant 0 : i32
    %c0_i32_0 = arith.constant 0 : i32
    %c0_i32_1 = arith.constant 0 : i32
    return %c0_i32, %c0_i32_0 : i32, i32
  }
  func.func @transform_5(%arg0: i32, %arg1: memref<16x4xi32, #tpu.memory_space<smem>>) -> (i32, i32) {
    %c0_i32 = arith.constant 0 : i32
    %c0_i32_0 = arith.constant 0 : i32
    %c0_i32_1 = arith.constant 0 : i32
    return %c0_i32, %c0_i32_0 : i32, i32
  }
  func.func @transform_6(%arg0: i32, %arg1: memref<16x4xi32, #tpu.memory_space<smem>>) -> (i32, i32) {
    %c0_i32 = arith.constant 0 : i32
    %c0_i32_0 = arith.constant 0 : i32
    %c0_i32_1 = arith.constant 0 : i32
    return %c0_i32, %c0_i32_0 : i32, i32
  }
  func.func @transform_7(%arg0: i32, %arg1: memref<16x4xi32, #tpu.memory_space<smem>>) -> (i32, i32) {
    %c0_i32 = arith.constant 0 : i32
    %c0_i32_0 = arith.constant 0 : i32
    %c0_i32_1 = arith.constant 0 : i32
    return %c0_i32, %c0_i32_0 : i32, i32
  }
  func.func @transform_8(%arg0: i32, %arg1: memref<16x4xi32, #tpu.memory_space<smem>>) -> (i32, i32) {
    %c0_i32 = arith.constant 0 : i32
    %c0_i32_0 = arith.constant 0 : i32
    %c0_i32_1 = arith.constant 0 : i32
    return %c0_i32, %c0_i32_0 : i32, i32
  }
  func.func @transform_9(%arg0: i32, %arg1: memref<16x4xi32, #tpu.memory_space<smem>>) -> (i32, i32) {
    %c0_i32 = arith.constant 0 : i32
    %c0_i32_0 = arith.constant 0 : i32
    return %arg0, %c0_i32 : i32, i32
  }
  func.func @transform_10(%arg0: i32, %arg1: memref<16x4xi32, #tpu.memory_space<smem>>) -> (i32, i32, i32) {
    %c0_i32 = arith.constant 0 : i32
    %c0_i32_0 = arith.constant 0 : i32
    %c0_i32_1 = arith.constant 0 : i32
    return %arg0, %c0_i32, %c0_i32_0 : i32, i32, i32
  }
  func.func @transform_11(%arg0: i32, %arg1: memref<16x4xi32, #tpu.memory_space<smem>>) -> (i32, i32) {
    %c0_i32 = arith.constant 0 : i32
    %c0_i32_0 = arith.constant 0 : i32
    return %arg0, %c0_i32 : i32, i32
  }
}

</mosaic_0001>

<llo_original>
// kernel: tpu_custom_call.1
$region0: #{tpu_custom_call.1}
  #allocation0 [shape = 'u32[]', space=smem, size = 0x4, offset = 0x4, fixed_abs, tag = 'smem constant byte address 0x4 - core index']
  #allocation1 [shape = 'u32[72,128]{1,0:T(1,128)}', space=vmem, size = 0x9000, scoped, tag = 'internal scratch']
  #allocation2 [shape = 's32[1]{0}', space=sflag, size = 0x4, scoped, tag = 'scoped memory for tpu_custom_call.1']
  #allocation3 [shape = 'u8[8192]{0}', space=smem, size = 0x2000, scoped, tag = 'prefetched SMEM operand 0']
  %s0 = inlined_call_operand.vmem [shape: s32[16,4], index: 0, kind: input, shape index: {}]
  %s1 = inlined_call_operand.hbm [shape: bf16[16,64,128], index: 1, kind: input, shape index: {}]
  %s2 = inlined_call_operand.vmem [shape: f32[16,128], index: 2, kind: input, shape index: {}]
  %s3 = inlined_call_operand.hbm [shape: bf16[128,128], index: 3, kind: input, shape index: {}]
  %s4 = inlined_call_operand.hbm [shape: bf16[128,128], index: 4, kind: input, shape index: {}]
  %s5 = inlined_call_operand.hbm [shape: bf16[128,128], index: 5, kind: input, shape index: {}]
  %s6 = inlined_call_operand.hbm [shape: bf16[256,128], index: 6, kind: input, shape index: {}]
  %s7 = inlined_call_operand.hbm [shape: bf16[256,128], index: 7, kind: input, shape index: {}]
  %s8 = inlined_call_operand.hbm [shape: bf16[256,128], index: 8, kind: input, shape index: {}]
  %s9 = inlined_call_operand.vmem [shape: f32[8,128], index: 9, kind: input, shape index: {}]
  %s10 = inlined_call_operand.hbm [shape: f32[16,128], index: 10, kind: output, shape index: {0}]
  %s11 = inlined_call_operand.hbm [shape: f32[16,64,128], index: 11, kind: output, shape index: {1}]
  %s12 = inlined_call_operand.hbm [shape: f32[16,128], index: 12, kind: output, shape index: {2}]
  %13 = xla_tuple %s10, %s11, %s12
  %s14 = sld [smem:[#allocation0]]
  $region113: #{tpu_custom_call.1} parent=0
    _
  %s16 = ssub.s32 1, %s14
  %s17 = scalar_select 0, %s16, %s14
  %s19 = sshll.u32 %s0, 4
  %s20 = int_to_ptr.vmem [resolvable:$true] %s19
  %22 = dma.vmem_to_smem %s20, 256, [#allocation3], [#allocation2]
  %24 = dma.done [#allocation2], 256
  %25 = sfence
  $region1: #{tpu_custom_call.1} parent=0
    #allocation4 [shape = 'u8[262144]{0}', space=vmem, size = 0x40000, scoped, tag = 'input window, operand 1']
    #allocation5 [shape = 's32[2]{0}', space=sflag, size = 0x8, scoped, tag = 'scoped memory for tpu_custom_call.1']
    #allocation6 [shape = 's32[2]{0}', space=sflag, size = 0x8, scoped, tag = 'scoped memory for tpu_custom_call.1']
    #allocation7 [shape = 'u8[32768]{0}', space=vmem, size = 0x8000, scoped, tag = 'input window, operand 3, single buffered']
    #allocation8 [shape = 's32[1]{0}', space=sflag, size = 0x4, scoped, tag = 'scoped memory for tpu_custom_call.1']
    #allocation9 [shape = 'u8[32768]{0}', space=vmem, size = 0x8000, scoped, tag = 'input window, operand 4, single buffered']
    #allocation10 [shape = 'u8[32768]{0}', space=vmem, size = 0x8000, scoped, tag = 'input window, operand 5, single buffered']
    #allocation11 [shape = 's32[1]{0}', space=sflag, size = 0x4, scoped, tag = 'scoped memory for tpu_custom_call.1']
    #allocation12 [shape = 'u8[65536]{0}', space=vmem, size = 0x10000, scoped, tag = 'input window, operand 6, single buffered']
    #allocation13 [shape = 'u8[65536]{0}', space=vmem, size = 0x10000, scoped, tag = 'input window, operand 7, single buffered']
    #allocation14 [shape = 's32[1]{0}', space=sflag, size = 0x4, scoped, tag = 'scoped memory for tpu_custom_call.1']
    #allocation15 [shape = 'u8[65536]{0}', space=vmem, size = 0x10000, scoped, tag = 'input window, operand 8, single buffered']
    #allocation16 [shape = 'u8[8192]{0}', space=vmem, size = 0x2000, scoped, tag = 'output window, operand 0']
    #allocation17 [shape = 'u8[524288]{0}', space=vmem, size = 0x80000, scoped, tag = 'output window, operand 1']
    #allocation18 [shape = 's32[2]{0}', space=sflag, size = 0x8, scoped, tag = 'scoped memory for tpu_custom_call.1']
    #allocation19 [shape = 'u8[8192]{0}', space=vmem, size = 0x2000, scoped, tag = 'output window, operand 2']
    %26 = vsyncpa [#allocation5], 0
    %s27 = scalar_lea.sflag [#allocation5], 1
    %28 = vsyncpa %s27, 0
    %29 = vsyncpa [#allocation8], 0
    %30 = vsyncpa [#allocation11], 0
    %31 = vsyncpa [#allocation14], 0
    %32 = vsyncpa [#allocation6], 0
    %s33 = scalar_lea.sflag [#allocation6], 1
    %34 = vsyncpa %s33, 0
    %35 = vsyncpa [#allocation18], 0
    %s36 = scalar_lea.sflag [#allocation18], 1
    %37 = vsyncpa %s36, 0
    loop: start=0, step=1, limit=4
    $region2: #{tpu_custom_call.1} parent=1 // loop_pre_header
      _
    $region3: #{tpu_custom_call.1} parent=1 // loop_header
      %s39 = sphi 0, %s43
      %p40 = scmp.ge.s32.totalorder %s39, 4
      %s49 = sphi 0, %s51
      %s52 = sphi 0, %s49
      %s53 = sphi 0, %s52
      %s69 = sphi 0, %s53
      %s75 = sphi 0, %s77
      %s78 = sphi 0, %s75
      %s79 = sphi 0, %s78
      %s95 = sphi 0, %s79
      %s99 = sphi 0, %s99
      %s101 = sphi 0, %s99
      %s102 = sphi 0, %s101
      %s116 = sphi 0, %s102
      %s120 = sphi 0, %s120
      %s122 = sphi 0, %s120
      %s123 = sphi 0, %s122
      %s137 = sphi 0, %s123
      %s141 = sphi 0, %s141
      %s143 = sphi 0, %s141
      %s144 = sphi 0, %s143
      %s158 = sphi 0, %s144
      %s162 = sphi 0, %s162
      %s164 = sphi 0, %s162
      %s165 = sphi 0, %s164
      %s179 = sphi 0, %s165
      %s183 = sphi 0, %s183
      %s185 = sphi 0, %s183
      %s186 = sphi 0, %s185
      %s200 = sphi 0, %s186
      %s204 = sphi 0, %s204
      %s206 = sphi 0, %s204
      %s207 = sphi 0, %s206
      %s221 = sphi 0, %s207
      %s225 = sphi 0, %s225
      %s227 = sphi 0, %s225
      %s228 = sphi 0, %s227
      %s242 = sphi 0, %s228
      %s248 = sphi 0, %s250
      %s251 = sphi 0, %s248
      %s252 = sphi 0, %s251
      %s268 = sphi 0, %s252
      %s274 = sphi 0, %s276
      %s277 = sphi 0, %s274
      %s278 = sphi 0, %s277
      %s294 = sphi 0, %s278
      %s300 = sphi 0, %s302
      %s303 = sphi 0, %s300
      %s304 = sphi 0, %s303
      %s320 = sphi 0, %s304
    $region4: #{tpu_custom_call.1} parent=1 // loop_header_branch
      %42 = sbr.rel (%p40) target = $region8
    $region5: #{tpu_custom_call.1} parent=1 // loop_body
      %s44 = ssub.s32 %s39, 1
      %s45 = ssub.s32 %s39, 2
      %s46 = sadd.s32 %s39, 1
      %s47 = ssub.s32 %s39, %s46
      %p48 = scmp.eq.s32.totalorder %s47, 0
      %s50 = sadd.s32 %s49, 1
      %s51 = scalar_select %p48, %s49, %s50
      %p54 = pneg %p48
      %p55 = scmp.eq.s32.totalorder %s39, 1
      %p56 = por %p54, %p55
      %p57 = scmp.ne.s32.totalorder %s49, %s52
      %p58 = scmp.eq.s32.totalorder %s39, 0
      %p59 = por %p57, %p58
      %p60 = scmp.ne.s32.totalorder %s49, %s52
      %p61 = scmp.eq.s32.totalorder %s44, 1
      %p62 = por %p60, %p61
      %p63 = scmp.ne.s32.totalorder %s52, %s53
      %p64 = scmp.eq.s32.totalorder %s44, 0
      %p65 = por %p63, %p64
      %p66 = scmp.ne.s32.totalorder %s52, %s53
      %p67 = scmp.eq.s32.totalorder %s45, 1
      %p68 = por %p66, %p67
      %p70 = scmp.ne.s32.totalorder %s53, %s69
      %p71 = scmp.eq.s32.totalorder %s45, 0
      %p72 = por %p70, %p71
      %s73 = ssub.s32 %s39, %s46
      %p74 = scmp.eq.s32.totalorder %s73, 0
      %s76 = sadd.s32 %s75, 1
      %s77 = scalar_select %p74, %s75, %s76
      %p80 = pneg %p74
      %p81 = scmp.eq.s32.totalorder %s39, 1
      %p82 = por %p80, %p81
      %p83 = scmp.ne.s32.totalorder %s75, %s78
      %p84 = scmp.eq.s32.totalorder %s39, 0
      %p85 = por %p83, %p84
      %p86 = scmp.ne.s32.totalorder %s75, %s78
      %p87 = scmp.eq.s32.totalorder %s44, 1
      %p88 = por %p86, %p87
      %p89 = scmp.ne.s32.totalorder %s78, %s79
      %p90 = scmp.eq.s32.totalorder %s44, 0
      %p91 = por %p89, %p90
      %p92 = scmp.ne.s32.totalorder %s78, %s79
      %p93 = scmp.eq.s32.totalorder %s45, 1
      %p94 = por %p92, %p93
      %p96 = scmp.ne.s32.totalorder %s79, %s95
      %p97 = scmp.eq.s32.totalorder %s45, 0
      %p98 = por %p96, %p97
      %s100 = sadd.s32 %s99, 1
      %p103 = scmp.eq.s32.totalorder %s39, 1
      %p104 = scmp.ne.s32.totalorder %s99, %s101
      %p105 = scmp.eq.s32.totalorder %s39, 0
      %p106 = por %p104, %p105
      %p107 = scmp.ne.s32.totalorder %s99, %s101
      %p108 = scmp.eq.s32.totalorder %s44, 1
      %p109 = por %p107, %p108
      %p110 = scmp.ne.s32.totalorder %s101, %s102
      %p111 = scmp.eq.s32.totalorder %s44, 0
      %p112 = por %p110, %p111
      %p113 = scmp.ne.s32.totalorder %s101, %s102
      %p114 = scmp.eq.s32.totalorder %s45, 1
      %p115 = por %p113, %p114
      %p117 = scmp.ne.s32.totalorder %s102, %s116
      %p118 = scmp.eq.s32.totalorder %s45, 0
      %p119 = por %p117, %p118
      %s121 = sadd.s32 %s120, 1
      %p124 = scmp.eq.s32.totalorder %s39, 1
      %p125 = scmp.ne.s32.totalorder %s120, %s122
      %p126 = scmp.eq.s32.totalorder %s39, 0
      %p127 = por %p125, %p126
      %p128 = scmp.ne.s32.totalorder %s120, %s122
      %p129 = scmp.eq.s32.totalorder %s44, 1
      %p130 = por %p128, %p129
      %p131 = scmp.ne.s32.totalorder %s122, %s123
      %p132 = scmp.eq.s32.totalorder %s44, 0
      %p133 = por %p131, %p132
      %p134 = scmp.ne.s32.totalorder %s122, %s123
      %p135 = scmp.eq.s32.totalorder %s45, 1
      %p136 = por %p134, %p135
      %p138 = scmp.ne.s32.totalorder %s123, %s137
      %p139 = scmp.eq.s32.totalorder %s45, 0
      %p140 = por %p138, %p139
      %s142 = sadd.s32 %s141, 1
      %p145 = scmp.eq.s32.totalorder %s39, 1
      %p146 = scmp.ne.s32.totalorder %s141, %s143
      %p147 = scmp.eq.s32.totalorder %s39, 0
      %p148 = por %p146, %p147
      %p149 = scmp.ne.s32.totalorder %s141, %s143
      %p150 = scmp.eq.s32.totalorder %s44, 1
      %p151 = por %p149, %p150
      %p152 = scmp.ne.s32.totalorder %s143, %s144
      %p153 = scmp.eq.s32.totalorder %s44, 0
      %p154 = por %p152, %p153
      %p155 = scmp.ne.s32.totalorder %s143, %s144
      %p156 = scmp.eq.s32.totalorder %s45, 1
      %p157 = por %p155, %p156
      %p159 = scmp.ne.s32.totalorder %s144, %s158
      %p160 = scmp.eq.s32.totalorder %s45, 0
      %p161 = por %p159, %p160
      %s163 = sadd.s32 %s162, 1
      %p166 = scmp.eq.s32.totalorder %s39, 1
      %p167 = scmp.ne.s32.totalorder %s162, %s164
      %p168 = scmp.eq.s32.totalorder %s39, 0
      %p169 = por %p167, %p168
      %p170 = scmp.ne.s32.totalorder %s162, %s164
      %p171 = scmp.eq.s32.totalorder %s44, 1
      %p172 = por %p170, %p171
      %p173 = scmp.ne.s32.totalorder %s164, %s165
      %p174 = scmp.eq.s32.totalorder %s44, 0
      %p175 = por %p173, %p174
      %p176 = scmp.ne.s32.totalorder %s164, %s165
      %p177 = scmp.eq.s32.totalorder %s45, 1
      %p178 = por %p176, %p177
      %p180 = scmp.ne.s32.totalorder %s165, %s179
      %p181 = scmp.eq.s32.totalorder %s45, 0
      %p182 = por %p180, %p181
      %s184 = sadd.s32 %s183, 1
      %p187 = scmp.eq.s32.totalorder %s39, 1
      %p188 = scmp.ne.s32.totalorder %s183, %s185
      %p189 = scmp.eq.s32.totalorder %s39, 0
      %p190 = por %p188, %p189
      %p191 = scmp.ne.s32.totalorder %s183, %s185
      %p192 = scmp.eq.s32.totalorder %s44, 1
      %p193 = por %p191, %p192
      %p194 = scmp.ne.s32.totalorder %s185, %s186
      %p195 = scmp.eq.s32.totalorder %s44, 0
      %p196 = por %p194, %p195
      %p197 = scmp.ne.s32.totalorder %s185, %s186
      %p198 = scmp.eq.s32.totalorder %s45, 1
      %p199 = por %p197, %p198
      %p201 = scmp.ne.s32.totalorder %s186, %s200
      %p202 = scmp.eq.s32.totalorder %s45, 0
      %p203 = por %p201, %p202
      %s205 = sadd.s32 %s204, 1
      %p208 = scmp.eq.s32.totalorder %s39, 1
      %p209 = scmp.ne.s32.totalorder %s204, %s206
      %p210 = scmp.eq.s32.totalorder %s39, 0
      %p211 = por %p209, %p210
      %p212 = scmp.ne.s32.totalorder %s204, %s206
      %p213 = scmp.eq.s32.totalorder %s44, 1
      %p214 = por %p212, %p213
      %p215 = scmp.ne.s32.totalorder %s206, %s207
      %p216 = scmp.eq.s32.totalorder %s44, 0
      %p217 = por %p215, %p216
      %p218 = scmp.ne.s32.totalorder %s206, %s207
      %p219 = scmp.eq.s32.totalorder %s45, 1
      %p220 = por %p218, %p219
      %p222 = scmp.ne.s32.totalorder %s207, %s221
      %p223 = scmp.eq.s32.totalorder %s45, 0
      %p224 = por %p222, %p223
      %s226 = sadd.s32 %s225, 1
      %p229 = scmp.eq.s32.totalorder %s39, 1
      %p230 = scmp.ne.s32.totalorder %s225, %s227
      %p231 = scmp.eq.s32.totalorder %s39, 0
      %p232 = por %p230, %p231
      %p233 = scmp.ne.s32.totalorder %s225, %s227
      %p234 = scmp.eq.s32.totalorder %s44, 1
      %p235 = por %p233, %p234
      %p236 = scmp.ne.s32.totalorder %s227, %s228
      %p237 = scmp.eq.s32.totalorder %s44, 0
      %p238 = por %p236, %p237
      %p239 = scmp.ne.s32.totalorder %s227, %s228
      %p240 = scmp.eq.s32.totalorder %s45, 1
      %p241 = por %p239, %p240
      %p243 = scmp.ne.s32.totalorder %s228, %s242
      %p244 = scmp.eq.s32.totalorder %s45, 0
      %p245 = por %p243, %p244
      %s246 = ssub.s32 %s39, %s46
      %p247 = scmp.eq.s32.totalorder %s246, 0
      %s249 = sadd.s32 %s248, 1
      %s250 = scalar_select %p247, %s248, %s249
      %p253 = pneg %p247
      %p254 = scmp.eq.s32.totalorder %s39, 1
      %p255 = por %p253, %p254
      %p256 = scmp.ne.s32.totalorder %s248, %s251
      %p257 = scmp.eq.s32.totalorder %s39, 0
      %p258 = por %p256, %p257
      %p259 = scmp.ne.s32.totalorder %s248, %s251
      %p260 = scmp.eq.s32.totalorder %s44, 1
      %p261 = por %p259, %p260
      %p262 = scmp.ne.s32.totalorder %s251, %s252
      %p263 = scmp.eq.s32.totalorder %s44, 0
      %p264 = por %p262, %p263
      %p265 = scmp.ne.s32.totalorder %s251, %s252
      %p266 = scmp.eq.s32.totalorder %s45, 1
      %p267 = por %p265, %p266
      %p269 = scmp.ne.s32.totalorder %s252, %s268
      %p270 = scmp.eq.s32.totalorder %s45, 0
      %p271 = por %p269, %p270
      %s272 = ssub.s32 %s39, %s46
      %p273 = scmp.eq.s32.totalorder %s272, 0
      %s275 = sadd.s32 %s274, 1
      %s276 = scalar_select %p273, %s274, %s275
      %p279 = pneg %p273
      %p280 = scmp.eq.s32.totalorder %s39, 1
      %p281 = por %p279, %p280
      %p282 = scmp.ne.s32.totalorder %s274, %s277
      %p283 = scmp.eq.s32.totalorder %s39, 0
      %p284 = por %p282, %p283
      %p285 = scmp.ne.s32.totalorder %s274, %s277
      %p286 = scmp.eq.s32.totalorder %s44, 1
      %p287 = por %p285, %p286
      %p288 = scmp.ne.s32.totalorder %s277, %s278
      %p289 = scmp.eq.s32.totalorder %s44, 0
      %p290 = por %p288, %p289
      %p291 = scmp.ne.s32.totalorder %s277, %s278
      %p292 = scmp.eq.s32.totalorder %s45, 1
      %p293 = por %p291, %p292
      %p295 = scmp.ne.s32.totalorder %s278, %s294
      %p296 = scmp.eq.s32.totalorder %s45, 0
      %p297 = por %p295, %p296
      %s298 = ssub.s32 %s39, %s46
      %p299 = scmp.eq.s32.totalorder %s298, 0
      %s301 = sadd.s32 %s300, 1
      %s302 = scalar_select %p299, %s300, %s301
      %p305 = pneg %p299
      %p306 = scmp.eq.s32.totalorder %s39, 1
      %p307 = por %p305, %p306
      %p308 = scmp.ne.s32.totalorder %s300, %s303
      %p309 = scmp.eq.s32.totalorder %s39, 0
      %p310 = por %p308, %p309
      %p311 = scmp.ne.s32.totalorder %s300, %s303
      %p312 = scmp.eq.s32.totalorder %s44, 1
      %p313 = por %p311, %p312
      %p314 = scmp.ne.s32.totalorder %s303, %s304
      %p315 = scmp.eq.s32.totalorder %s44, 0
      %p316 = por %p314, %p315
      %p317 = scmp.ne.s32.totalorder %s303, %s304
      %p318 = scmp.eq.s32.totalorder %s45, 1
      %p319 = por %p317, %p318
      %p321 = scmp.ne.s32.totalorder %s304, %s320
      %p322 = scmp.eq.s32.totalorder %s45, 0
      %p323 = por %p321, %p322
      %p324 = scmp.le.s32.totalorder 1, %s39
      %p325 = scmp.lt.s32.totalorder %s39, 3
      %p326 = pnand %p324, %p325
      %p327 = pneg %p326
      // Predicated region
      $region9: #{tpu_custom_call.1} parent=5 // pred_check
        _
      $region10: #{tpu_custom_call.1} parent=5 // pred_check_branch
        %329 = sbr.rel (%p326) target = $region12
      $region11: #{tpu_custom_call.1} parent=5 // pred_region
        %s330 = ssub.s32 %s39, 1
        // Predicated region
        $region13: #{tpu_custom_call.1} parent=11 // pred_check
          %p331 = pneg %p112
        $region14: #{tpu_custom_call.1} parent=11 // pred_check_branch
          %333 = sbr.rel (%p331) target = $region16
        $region15: #{tpu_custom_call.1} parent=11 // pred_region
          %335 = vsyncadd [#allocation8], 0
          %s336 = sshll.u32 %s3, 4
          %s337 = int_to_ptr.hbm [resolvable:$true] %s336
          %s338 = sshll.u32 [#allocation7], 4
          %s339 = int_to_ptr.vmem [resolvable:$true] %s338
          %344 = dma.hbm_to_vmem [thread:$0]  %s337, 1024, %s339, [#allocation8], 64, 64, 4
        $region16: #{tpu_custom_call.1} parent=11 // pred_fallthru
          _
        // Predicated region
        $region17: #{tpu_custom_call.1} parent=11 // pred_check
          %p345 = pneg %p133
        $region18: #{tpu_custom_call.1} parent=11 // pred_check_branch
          %347 = sbr.rel (%p345) target = $region20
        $region19: #{tpu_custom_call.1} parent=11 // pred_region
          %349 = vsyncadd [#allocation8], 0
          %s350 = sshll.u32 %s4, 4
          %s351 = int_to_ptr.hbm [resolvable:$true] %s350
          %s352 = sshll.u32 [#allocation9], 4
          %s353 = int_to_ptr.vmem [resolvable:$true] %s352
          %358 = dma.hbm_to_vmem [thread:$0]  %s351, 1024, %s353, [#allocation8], 64, 64, 4
        $region20: #{tpu_custom_call.1} parent=11 // pred_fallthru
          _
        // Predicated region
        $region21: #{tpu_custom_call.1} parent=11 // pred_check
          %p359 = pneg %p154
        $region22: #{tpu_custom_call.1} parent=11 // pred_check_branch
          %361 = sbr.rel (%p359) target = $region24
        $region23: #{tpu_custom_call.1} parent=11 // pred_region
          %363 = vsyncadd [#allocation11], 0
          %s364 = sshll.u32 %s5, 4
          %s365 = int_to_ptr.hbm [resolvable:$true] %s364
          %s366 = sshll.u32 [#allocation10], 4
          %s367 = int_to_ptr.vmem [resolvable:$true] %s366
          %372 = dma.hbm_to_vmem [thread:$0]  %s365, 1024, %s367, [#allocation11], 64, 64, 4
        $region24: #{tpu_custom_call.1} parent=11 // pred_fallthru
          _
        // Predicated region
        $region25: #{tpu_custom_call.1} parent=11 // pred_check
          %p373 = pneg %p175
        $region26: #{tpu_custom_call.1} parent=11 // pred_check_branch
          %375 = sbr.rel (%p373) target = $region28
        $region27: #{tpu_custom_call.1} parent=11 // pred_region
          %377 = vsyncadd [#allocation11], 0
          %s378 = sshll.u32 %s6, 4
          %s379 = int_to_ptr.hbm [resolvable:$true] %s378
          %s380 = sshll.u32 [#allocation12], 4
          %s381 = int_to_ptr.vmem [resolvable:$true] %s380
          %386 = dma.hbm_to_vmem [thread:$0]  %s379, 2048, %s381, [#allocation11], 64, 64, 4
        $region28: #{tpu_custom_call.1} parent=11 // pred_fallthru
          _
        // Predicated region
        $region29: #{tpu_custom_call.1} parent=11 // pred_check
          %p387 = pneg %p196
        $region30: #{tpu_custom_call.1} parent=11 // pred_check_branch
          %389 = sbr.rel (%p387) target = $region32
        $region31: #{tpu_custom_call.1} parent=11 // pred_region
          %391 = vsyncadd [#allocation14], 0
          %s392 = sshll.u32 %s7, 4
          %s393 = int_to_ptr.hbm [resolvable:$true] %s392
          %s394 = sshll.u32 [#allocation13], 4
          %s395 = int_to_ptr.vmem [resolvable:$true] %s394
          %400 = dma.hbm_to_vmem [thread:$0]  %s393, 2048, %s395, [#allocation14], 64, 64, 4
        $region32: #{tpu_custom_call.1} parent=11 // pred_fallthru
          _
        // Predicated region
        $region33: #{tpu_custom_call.1} parent=11 // pred_check
          %p401 = pneg %p217
        $region34: #{tpu_custom_call.1} parent=11 // pred_check_branch
          %403 = sbr.rel (%p401) target = $region36
        $region35: #{tpu_custom_call.1} parent=11 // pred_region
          %405 = vsyncadd [#allocation14], 0
          %s406 = sshll.u32 %s8, 4
          %s407 = int_to_ptr.hbm [resolvable:$true] %s406
          %s408 = sshll.u32 [#allocation15], 4
          %s409 = int_to_ptr.vmem [resolvable:$true] %s408
          %414 = dma.hbm_to_vmem [thread:$0]  %s407, 2048, %s409, [#allocation14], 64, 64, 4
        $region36: #{tpu_custom_call.1} parent=11 // pred_fallthru
          _
        // Predicated region
        $region37: #{tpu_custom_call.1} parent=11 // pred_check
          %p415 = pneg %p238
        $region38: #{tpu_custom_call.1} parent=11 // pred_check_branch
          %417 = sbr.rel (%p415) target = $region40
        $region39: #{tpu_custom_call.1} parent=11 // pred_region
          _
        $region40: #{tpu_custom_call.1} parent=11 // pred_fallthru
          _
      $region12: #{tpu_custom_call.1} parent=5 // pred_fallthru
        _
      %p418 = scmp.lt.s32.totalorder %s39, 2
      // Predicated region
      $region41: #{tpu_custom_call.1} parent=5 // pred_check
        %p419 = pneg %p418
      $region42: #{tpu_custom_call.1} parent=5 // pred_check_branch
        %421 = sbr.rel (%p419) target = $region44
      $region43: #{tpu_custom_call.1} parent=5 // pred_region
        // Predicated region
        $region45: #{tpu_custom_call.1} parent=43 // pred_check
          %p422 = pneg %p59
        $region46: #{tpu_custom_call.1} parent=43 // pred_check_branch
          %424 = sbr.rel (%p422) target = $region48
        $region47: #{tpu_custom_call.1} parent=43 // pred_region
          %s425 = sand.u32 %s49, 1
          %s426 = scalar_lea.sflag [#allocation5], %s425
          %s427 = sand.u32 %s49, 1
          %s428 = smul.addr %s427, 256
          %s429 = scalar_lea.vmem [#allocation4], %s428
          %s430 = smul.u32 8, %s39
          %432 = vsyncadd %s426, 0
          %s433 = smul.addr %s430, 8
          %s434 = smul.addr %s433, 4
          %s435 = scalar_lea.hbm %s1, %s434
          %s436 = sshll.u32 %s435, 4
          %s437 = int_to_ptr.hbm [resolvable:$true] %s436
          %s438 = sshll.u32 %s429, 4
          %s439 = int_to_ptr.vmem [resolvable:$true] %s438
          %444 = dma.hbm_to_vmem [thread:$0]  %s437, 4096, %s439, %s426, 64, 64, 4
        $region48: #{tpu_custom_call.1} parent=43 // pred_fallthru
          _
        // Predicated region
        $region49: #{tpu_custom_call.1} parent=43 // pred_check
          %p445 = pneg %p85
        $region50: #{tpu_custom_call.1} parent=43 // pred_check_branch
          %447 = sbr.rel (%p445) target = $region52
        $region51: #{tpu_custom_call.1} parent=43 // pred_region
          %p448 = scmp.lt.s32.totalorder %s39, 1
          %s449 = scalar_select %p448, %s39, 1
          %s450 = smul.addr %s449, 8
          %s451 = scalar_lea.vmem %s2, %s450
        $region52: #{tpu_custom_call.1} parent=43 // pred_fallthru
          _
      $region44: #{tpu_custom_call.1} parent=5 // pred_fallthru
        _
      %p452 = scmp.le.s32.totalorder 1, %s39
      %p453 = scmp.lt.s32.totalorder %s39, 3
      %p454 = pnand %p452, %p453
      %p455 = pneg %p454
      // Predicated region
      $region53: #{tpu_custom_call.1} parent=5 // pred_check
        _
      $region54: #{tpu_custom_call.1} parent=5 // pred_check_branch
        %457 = sbr.rel (%p454) target = $region56
      $region55: #{tpu_custom_call.1} parent=5 // pred_region
        %s458 = ssub.s32 %s39, 1
        %s459 = sand.u32 %s52, 1
        %s460 = scalar_lea.sflag [#allocation5], %s459
        %s461 = sand.u32 %s52, 1
        %s462 = smul.addr %s461, 256
        %s463 = scalar_lea.vmem [#allocation4], %s462
        // Predicated region
        $region57: #{tpu_custom_call.1} parent=55 // pred_check
          %p464 = pneg %p65
        $region58: #{tpu_custom_call.1} parent=55 // pred_check_branch
          %466 = sbr.rel (%p464) target = $region60
        $region59: #{tpu_custom_call.1} parent=55 // pred_region
          %468 = dma.done %s460, 4096
        $region60: #{tpu_custom_call.1} parent=55 // pred_fallthru
          _
        // Predicated region
        $region61: #{tpu_custom_call.1} parent=55 // pred_check
          %p469 = pneg %p112
        $region62: #{tpu_custom_call.1} parent=55 // pred_check_branch
          %471 = sbr.rel (%p469) target = $region64
        $region63: #{tpu_custom_call.1} parent=55 // pred_region
          %473 = dma.done [#allocation8], 1024
        $region64: #{tpu_custom_call.1} parent=55 // pred_fallthru
          _
        // Predicated region
        $region65: #{tpu_custom_call.1} parent=55 // pred_check
          %p474 = pneg %p133
        $region66: #{tpu_custom_call.1} parent=55 // pred_check_branch
          %476 = sbr.rel (%p474) target = $region68
        $region67: #{tpu_custom_call.1} parent=55 // pred_region
          %478 = dma.done [#allocation8], 1024
        $region68: #{tpu_custom_call.1} parent=55 // pred_fallthru
          _
        // Predicated region
        $region69: #{tpu_custom_call.1} parent=55 // pred_check
          %p479 = pneg %p154
        $region70: #{tpu_custom_call.1} parent=55 // pred_check_branch
          %481 = sbr.rel (%p479) target = $region72
        $region71: #{tpu_custom_call.1} parent=55 // pred_region
          %483 = dma.done [#allocation11], 1024
        $region72: #{tpu_custom_call.1} parent=55 // pred_fallthru
          _
        // Predicated region
        $region73: #{tpu_custom_call.1} parent=55 // pred_check
          %p484 = pneg %p175
        $region74: #{tpu_custom_call.1} parent=55 // pred_check_branch
          %486 = sbr.rel (%p484) target = $region76
        $region75: #{tpu_custom_call.1} parent=55 // pred_region
          %488 = dma.done [#allocation11], 2048
        $region76: #{tpu_custom_call.1} parent=55 // pred_fallthru
          _
        // Predicated region
        $region77: #{tpu_custom_call.1} parent=55 // pred_check
          %p489 = pneg %p196
        $region78: #{tpu_custom_call.1} parent=55 // pred_check_branch
          %491 = sbr.rel (%p489) target = $region80
        $region79: #{tpu_custom_call.1} parent=55 // pred_region
          %493 = dma.done [#allocation14], 2048
        $region80: #{tpu_custom_call.1} parent=55 // pred_fallthru
          _
        // Predicated region
        $region81: #{tpu_custom_call.1} parent=55 // pred_check
          %p494 = pneg %p217
        $region82: #{tpu_custom_call.1} parent=55 // pred_check_branch
          %496 = sbr.rel (%p494) target = $region84
        $region83: #{tpu_custom_call.1} parent=55 // pred_region
          %498 = dma.done [#allocation14], 2048
        $region84: #{tpu_custom_call.1} parent=55 // pred_fallthru
          _
        %s499 = sand.u32 %s52, 1
        %s500 = scalar_lea.sflag [#allocation5], %s499
        %s501 = sand.u32 %s52, 1
        %s502 = smul.addr %s501, 256
        %s503 = scalar_lea.vmem [#allocation4], %s502
        %p504 = pneg %p65
        %p505 = pneg %p62
        %p506 = scmp.lt.s32.totalorder %s44, 1
        %s507 = scalar_select %p506, %s44, 1
        %s508 = smul.addr %s507, 8
        %s509 = scalar_lea.vmem %s2, %s508
        %p510 = pneg %p91
        %p511 = pneg %p88
        %p512 = pneg %p112
        %p513 = pneg %p109
        %p514 = pneg %p133
        %p515 = pneg %p130
        %p516 = pneg %p154
        %p517 = pneg %p151
        %p518 = pneg %p175
        %p519 = pneg %p172
        %p520 = pneg %p196
        %p521 = pneg %p193
        %p522 = pneg %p217
        %p523 = pneg %p214
        %p524 = pneg %p238
        %p525 = pneg %p235
        %p526 = pneg %p264
        %p527 = pneg %p261
        %s528 = sand.u32 %s251, 1
        %s529 = scalar_lea.sflag [#allocation6], %s528
        %s530 = sand.u32 %s251, 1
        %s531 = smul.addr %s530, 8
        %s532 = scalar_lea.vmem [#allocation16], %s531
        %p533 = pneg %p290
        %p534 = pneg %p287
        %s535 = sand.u32 %s44, 1
        %s536 = scalar_lea.sflag [#allocation18], %s535
        %s537 = sand.u32 %s277, 1
        %s538 = smul.addr %s537, 512
        %s539 = scalar_lea.vmem [#allocation17], %s538
        %p540 = pneg %p316
        %p541 = pneg %p313
        %s542 = sand.u32 %s44, 1
        %s543 = scalar_lea.sflag [#allocation18], %s542
        %s544 = sand.u32 %s303, 1
        %s545 = smul.addr %s544, 8
        %s546 = scalar_lea.vmem [#allocation19], %s545
        %s547 = smul.u32 8, %s44
        %p548 = scmp.lt.s32.totalorder %s44, 1
        %s549 = scalar_select %p548, %s44, 1
        %s550 = smul.addr %s549, 8
        %s551 = scalar_lea.vmem %s2, %s550
        %s552 = smul.u32 8, %s44
        %v553 = vld [vmem:[%s9] sm:$0x1]
        %v554 = vld [vmem:[%s9 + $0x1] sm:$0x1]
        %v555 = vld [vmem:[%s9 + $0x2] sm:$0x1]
        %v556 = vld [vmem:[%s9 + $0x3] sm:$0x1]
        %v557 = vld [vmem:[%s9 + $0x4] sm:$0x1]
        %v558 = vld [vmem:[%s9 + $0x5] sm:$0x1]
        %v559 = vld [vmem:[%s9 + $0x6] sm:$0x1]
        %v560 = vld [vmem:[%s9 + $0x7] sm:$0x1]
        %v561 = vld [vmem:[%s463] sm:$0xf]
        %v562 = vld [vmem:[%s463 + $0x4] sm:$0xf]
        %v563 = vld [vmem:[%s463 + $0x8] sm:$0xf]
        %v564 = vld [vmem:[%s463 + $0xc] sm:$0xf]
        %v565 = vld [vmem:[%s463 + $0x10] sm:$0xf]
        %v566 = vld [vmem:[%s463 + $0x14] sm:$0xf]
        %v567 = vld [vmem:[%s463 + $0x18] sm:$0xf]
        %v568 = vld [vmem:[%s463 + $0x1c] sm:$0xf]
        %v569 = vld [vmem:[%s463 + $0x20] sm:$0xf]
        %v570 = vld [vmem:[%s463 + $0x24] sm:$0xf]
        %v571 = vld [vmem:[%s463 + $0x28] sm:$0xf]
        %v572 = vld [vmem:[%s463 + $0x2c] sm:$0xf]
        %v573 = vld [vmem:[%s463 + $0x30] sm:$0xf]
        %v574 = vld [vmem:[%s463 + $0x34] sm:$0xf]
        %v575 = vld [vmem:[%s463 + $0x38] sm:$0xf]
        %v576 = vld [vmem:[%s463 + $0x3c] sm:$0xf]
        %v577 = vld [vmem:[%s463 + $0x40] sm:$0xf]
        %v578 = vld [vmem:[%s463 + $0x44] sm:$0xf]
        %v579 = vld [vmem:[%s463 + $0x48] sm:$0xf]
        %v580 = vld [vmem:[%s463 + $0x4c] sm:$0xf]
        %v581 = vld [vmem:[%s463 + $0x50] sm:$0xf]
        %v582 = vld [vmem:[%s463 + $0x54] sm:$0xf]
        %v583 = vld [vmem:[%s463 + $0x58] sm:$0xf]
        %v584 = vld [vmem:[%s463 + $0x5c] sm:$0xf]
        %v585 = vld [vmem:[%s463 + $0x60] sm:$0xf]
        %v586 = vld [vmem:[%s463 + $0x64] sm:$0xf]
        %v587 = vld [vmem:[%s463 + $0x68] sm:$0xf]
        %v588 = vld [vmem:[%s463 + $0x6c] sm:$0xf]
        %v589 = vld [vmem:[%s463 + $0x70] sm:$0xf]
        %v590 = vld [vmem:[%s463 + $0x74] sm:$0xf]
        %v591 = vld [vmem:[%s463 + $0x78] sm:$0xf]
        %v592 = vld [vmem:[%s463 + $0x7c] sm:$0xf]
        %v593 = vld [vmem:[%s463 + $0x80] sm:$0xf]
        %v594 = vld [vmem:[%s463 + $0x84] sm:$0xf]
        %v595 = vld [vmem:[%s463 + $0x88] sm:$0xf]
        %v596 = vld [vmem:[%s463 + $0x8c] sm:$0xf]
        %v597 = vld [vmem:[%s463 + $0x90] sm:$0xf]
        %v598 = vld [vmem:[%s463 + $0x94] sm:$0xf]
        %v599 = vld [vmem:[%s463 + $0x98] sm:$0xf]
        %v600 = vld [vmem:[%s463 + $0x9c] sm:$0xf]
        %v601 = vld [vmem:[%s463 + $0xa0] sm:$0xf]
        %v602 = vld [vmem:[%s463 + $0xa4] sm:$0xf]
        %v603 = vld [vmem:[%s463 + $0xa8] sm:$0xf]
        %v604 = vld [vmem:[%s463 + $0xac] sm:$0xf]
        %v605 = vld [vmem:[%s463 + $0xb0] sm:$0xf]
        %v606 = vld [vmem:[%s463 + $0xb4] sm:$0xf]
        %v607 = vld [vmem:[%s463 + $0xb8] sm:$0xf]
        %v608 = vld [vmem:[%s463 + $0xbc] sm:$0xf]
        %v609 = vld [vmem:[%s463 + $0xc0] sm:$0xf]
        %v610 = vld [vmem:[%s463 + $0xc4] sm:$0xf]
        %v611 = vld [vmem:[%s463 + $0xc8] sm:$0xf]
        %v612 = vld [vmem:[%s463 + $0xcc] sm:$0xf]
        %v613 = vld [vmem:[%s463 + $0xd0] sm:$0xf]
        %v614 = vld [vmem:[%s463 + $0xd4] sm:$0xf]
        %v615 = vld [vmem:[%s463 + $0xd8] sm:$0xf]
        %v616 = vld [vmem:[%s463 + $0xdc] sm:$0xf]
        %v617 = vld [vmem:[%s463 + $0xe0] sm:$0xf]
        %v618 = vld [vmem:[%s463 + $0xe4] sm:$0xf]
        %v619 = vld [vmem:[%s463 + $0xe8] sm:$0xf]
        %v620 = vld [vmem:[%s463 + $0xec] sm:$0xf]
        %v621 = vld [vmem:[%s463 + $0xf0] sm:$0xf]
        %v622 = vld [vmem:[%s463 + $0xf4] sm:$0xf]
        %v623 = vld [vmem:[%s463 + $0xf8] sm:$0xf]
        %v624 = vld [vmem:[%s463 + $0xfc] sm:$0xf]
        %v625 = vld [vmem:[#allocation7] sm:$0xf]
        %v626 = vld [vmem:[#allocation7 + $0x4] sm:$0xf]
        %v627 = vld [vmem:[#allocation7 + $0x8] sm:$0xf]
        %v628 = vld [vmem:[#allocation7 + $0xc] sm:$0xf]
        %v629 = vld [vmem:[#allocation7 + $0x10] sm:$0xf]
        %v630 = vld [vmem:[#allocation7 + $0x14] sm:$0xf]
        %v631 = vld [vmem:[#allocation7 + $0x18] sm:$0xf]
        %v632 = vld [vmem:[#allocation7 + $0x1c] sm:$0xf]
        %v633 = vld [vmem:[#allocation7 + $0x20] sm:$0xf]
        %v634 = vld [vmem:[#allocation7 + $0x24] sm:$0xf]
        %v635 = vld [vmem:[#allocation7 + $0x28] sm:$0xf]
        %v636 = vld [vmem:[#allocation7 + $0x2c] sm:$0xf]
        %v637 = vld [vmem:[#allocation7 + $0x30] sm:$0xf]
        %v638 = vld [vmem:[#allocation7 + $0x34] sm:$0xf]
        %v639 = vld [vmem:[#allocation7 + $0x38] sm:$0xf]
        %v640 = vld [vmem:[#allocation7 + $0x3c] sm:$0xf]
        %v641 = vperm.slane %v553, 0
        %v706 = vunpack.c.l.b16 %v561
        %v707 = vunpack.c.l.b16 %v562
        %v708 = vunpack.c.l.b16 %v563
        %v709 = vunpack.c.l.b16 %v564
        %v710 = vunpack.c.l.b16 %v565
        %v711 = vunpack.c.l.b16 %v566
        %v712 = vunpack.c.l.b16 %v567
        %v713 = vunpack.c.l.b16 %v568
        %v714 = vunpack.c.l.b16 %v569
        %v715 = vunpack.c.l.b16 %v570
        %v716 = vunpack.c.l.b16 %v571
        %v717 = vunpack.c.l.b16 %v572
        %v718 = vunpack.c.l.b16 %v573
        %v719 = vunpack.c.l.b16 %v574
        %v720 = vunpack.c.l.b16 %v575
        %v721 = vunpack.c.l.b16 %v576
        %v722 = vunpack.c.l.b16 %v577
        %v723 = vunpack.c.l.b16 %v578
        %v724 = vunpack.c.l.b16 %v579
        %v725 = vunpack.c.l.b16 %v580
        %v726 = vunpack.c.l.b16 %v581
        %v727 = vunpack.c.l.b16 %v582
        %v728 = vunpack.c.l.b16 %v583
        %v729 = vunpack.c.l.b16 %v584
        %v730 = vunpack.c.l.b16 %v585
        %v731 = vunpack.c.l.b16 %v586
        %v732 = vunpack.c.l.b16 %v587
        %v733 = vunpack.c.l.b16 %v588
        %v734 = vunpack.c.l.b16 %v589
        %v735 = vunpack.c.l.b16 %v590
        %v736 = vunpack.c.l.b16 %v591
        %v737 = vunpack.c.l.b16 %v592
        %v738 = vunpack.c.l.b16 %v593
        %v739 = vunpack.c.l.b16 %v594
        %v740 = vunpack.c.l.b16 %v595
        %v741 = vunpack.c.l.b16 %v596
        %v742 = vunpack.c.l.b16 %v597
        %v743 = vunpack.c.l.b16 %v598
        %v744 = vunpack.c.l.b16 %v599
        %v745 = vunpack.c.l.b16 %v600
        %v746 = vunpack.c.l.b16 %v601
        %v747 = vunpack.c.l.b16 %v602
        %v748 = vunpack.c.l.b16 %v603
        %v749 = vunpack.c.l.b16 %v604
        %v750 = vunpack.c.l.b16 %v605
        %v751 = vunpack.c.l.b16 %v606
        %v752 = vunpack.c.l.b16 %v607
        %v753 = vunpack.c.l.b16 %v608
        %v754 = vunpack.c.l.b16 %v609
        %v755 = vunpack.c.l.b16 %v610
        %v756 = vunpack.c.l.b16 %v611
        %v757 = vunpack.c.l.b16 %v612
        %v758 = vunpack.c.l.b16 %v613
        %v759 = vunpack.c.l.b16 %v614
        %v760 = vunpack.c.l.b16 %v615
        %v761 = vunpack.c.l.b16 %v616
        %v762 = vunpack.c.l.b16 %v617
        %v763 = vunpack.c.l.b16 %v618
        %v764 = vunpack.c.l.b16 %v619
        %v765 = vunpack.c.l.b16 %v620
        %v766 = vunpack.c.l.b16 %v621
        %v767 = vunpack.c.l.b16 %v622
        %v768 = vunpack.c.l.b16 %v623
        %v769 = vunpack.c.l.b16 %v624
        %v770 = vpack.c.b16 %v707, %v706
        %v771 = vpack.c.b16 %v709, %v708
        %v772 = vpack.c.b16 %v711, %v710
        %v773 = vpack.c.b16 %v713, %v712
        %v774 = vpack.c.b16 %v715, %v714
        %v775 = vpack.c.b16 %v717, %v716
        %v776 = vpack.c.b16 %v719, %v718
        %v777 = vpack.c.b16 %v721, %v720
        %v778 = vpack.c.b16 %v723, %v722
        %v779 = vpack.c.b16 %v725, %v724
        %v780 = vpack.c.b16 %v727, %v726
        %v781 = vpack.c.b16 %v729, %v728
        %v782 = vpack.c.b16 %v731, %v730
        %v783 = vpack.c.b16 %v733, %v732
        %v784 = vpack.c.b16 %v735, %v734
        %v785 = vpack.c.b16 %v737, %v736
        %v786 = vpack.c.b16 %v739, %v738
        %v787 = vpack.c.b16 %v741, %v740
        %v788 = vpack.c.b16 %v743, %v742
        %v789 = vpack.c.b16 %v745, %v744
        %v790 = vpack.c.b16 %v747, %v746
        %v791 = vpack.c.b16 %v749, %v748
        %v792 = vpack.c.b16 %v751, %v750
        %v793 = vpack.c.b16 %v753, %v752
        %v794 = vpack.c.b16 %v755, %v754
        %v795 = vpack.c.b16 %v757, %v756
        %v796 = vpack.c.b16 %v759, %v758
        %v797 = vpack.c.b16 %v761, %v760
        %v798 = vpack.c.b16 %v763, %v762
        %v799 = vpack.c.b16 %v765, %v764
        %v800 = vpack.c.b16 %v767, %v766
        %v801 = vpack.c.b16 %v769, %v768
        %v850 = vunpack.c.l.b16 %v625
        %v851 = vunpack.c.l.b16 %v626
        %v852 = vunpack.c.l.b16 %v627
        %v853 = vunpack.c.l.b16 %v628
        %v854 = vunpack.c.l.b16 %v629
        %v855 = vunpack.c.l.b16 %v630
        %v856 = vunpack.c.l.b16 %v631
        %v857 = vunpack.c.l.b16 %v632
        %v858 = vunpack.c.l.b16 %v633
        %v859 = vunpack.c.l.b16 %v634
        %v860 = vunpack.c.l.b16 %v635
        %v861 = vunpack.c.l.b16 %v636
        %v862 = vunpack.c.l.b16 %v637
        %v863 = vunpack.c.l.b16 %v638
        %v864 = vunpack.c.l.b16 %v639
        %v865 = vunpack.c.l.b16 %v640
        %v866 = vpack.c.b16 %v851, %v850
        %v867 = vpack.c.b16 %v853, %v852
        %v868 = vpack.c.b16 %v855, %v854
        %v869 = vpack.c.b16 %v857, %v856
        %v870 = vpack.c.b16 %v859, %v858
        %v871 = vpack.c.b16 %v861, %v860
        %v872 = vpack.c.b16 %v863, %v862
        %v873 = vpack.c.b16 %v865, %v864
        %882 = vmatpush.bf16.msra.mxu0 %v873
        %883 = vmatpush.bf16.msra.mxu0 %v872
        %884 = vmatpush.bf16.msra.mxu0 %v871
        %885 = vmatpush.bf16.msra.mxu0 %v870
        %886 = vmatpush.bf16.msra.mxu0 %v869
        %887 = vmatpush.bf16.msra.mxu0 %v868
        %888 = vmatpush.bf16.msra.mxu0 %v867
        %889 = vmatpush.bf16.msra.mxu0 %v866
        %890 = vmatmul.bf16.gmra.mxu0 %v770
        %v891 = vpop.f32.mrf.mxu0
        %v892 = vadd.f32 %v641, %v891
        %v893 = vpop.f32.mrf.mxu0
        %v894 = vadd.f32 %v641, %v893
        %895 = vmatmul.bf16.gmra.mxu0 %v771
        %v896 = vpop.f32.mrf.mxu0
        %v897 = vadd.f32 %v641, %v896
        %v898 = vpop.f32.mrf.mxu0
        %v899 = vadd.f32 %v641, %v898
        %900 = vmatmul.bf16.gmra.mxu0 %v772
        %v901 = vpop.f32.mrf.mxu0
        %v902 = vadd.f32 %v641, %v901
        %v903 = vpop.f32.mrf.mxu0
        %v904 = vadd.f32 %v641, %v903
        %905 = vmatmul.bf16.gmra.mxu0 %v773
        %v906 = vpop.f32.mrf.mxu0
        %v907 = vadd.f32 %v641, %v906
        %v908 = vpop.f32.mrf.mxu0
        %v909 = vadd.f32 %v641, %v908
        %910 = vmatmul.bf16.gmra.mxu0 %v774
        %v911 = vpop.f32.mrf.mxu0
        %v912 = vadd.f32 %v641, %v911
        %v913 = vpop.f32.mrf.mxu0
        %v914 = vadd.f32 %v641, %v913
        %915 = vmatmul.bf16.gmra.mxu0 %v775
        %v916 = vpop.f32.mrf.mxu0
        %v917 = vadd.f32 %v641, %v916
        %v918 = vpop.f32.mrf.mxu0
        %v919 = vadd.f32 %v641, %v918
        %920 = vmatmul.bf16.gmra.mxu0 %v776
        %v921 = vpop.f32.mrf.mxu0
        %v922 = vadd.f32 %v641, %v921
        %v923 = vpop.f32.mrf.mxu0
        %v924 = vadd.f32 %v641, %v923
        %925 = vmatmul.bf16.gmra.mxu0 %v777
        %v926 = vpop.f32.mrf.mxu0
        %v927 = vadd.f32 %v641, %v926
        %v928 = vpop.f32.mrf.mxu0
        %v929 = vadd.f32 %v641, %v928
        %930 = vmatmul.bf16.gmra.mxu0 %v778
        %v931 = vpop.f32.mrf.mxu0
        %v932 = vadd.f32 %v641, %v931
        %v933 = vpop.f32.mrf.mxu0
        %v934 = vadd.f32 %v641, %v933
        %935 = vmatmul.bf16.gmra.mxu0 %v779
        %v936 = vpop.f32.mrf.mxu0
        %v937 = vadd.f32 %v641, %v936
        %v938 = vpop.f32.mrf.mxu0
        %v939 = vadd.f32 %v641, %v938
        %940 = vmatmul.bf16.gmra.mxu0 %v780
        %v941 = vpop.f32.mrf.mxu0
        %v942 = vadd.f32 %v641, %v941
        %v943 = vpop.f32.mrf.mxu0
        %v944 = vadd.f32 %v641, %v943
        %945 = vmatmul.bf16.gmra.mxu0 %v781
        %v946 = vpop.f32.mrf.mxu0
        %v947 = vadd.f32 %v641, %v946
        %v948 = vpop.f32.mrf.mxu0
        %v949 = vadd.f32 %v641, %v948
        %950 = vmatmul.bf16.gmra.mxu0 %v782
        %v951 = vpop.f32.mrf.mxu0
        %v952 = vadd.f32 %v641, %v951
        %v953 = vpop.f32.mrf.mxu0
        %v954 = vadd.f32 %v641, %v953
        %955 = vmatmul.bf16.gmra.mxu0 %v783
        %v956 = vpop.f32.mrf.mxu0
        %v957 = vadd.f32 %v641, %v956
        %v958 = vpop.f32.mrf.mxu0
        %v959 = vadd.f32 %v641, %v958
        %960 = vmatmul.bf16.gmra.mxu0 %v784
        %v961 = vpop.f32.mrf.mxu0
        %v962 = vadd.f32 %v641, %v961
        %v963 = vpop.f32.mrf.mxu0
        %v964 = vadd.f32 %v641, %v963
        %965 = vmatmul.bf16.gmra.mxu0 %v785
        %v966 = vpop.f32.mrf.mxu0
        %v967 = vadd.f32 %v641, %v966
        %v968 = vpop.f32.mrf.mxu0
        %v969 = vadd.f32 %v641, %v968
        %970 = vmatmul.bf16.gmra.mxu0 %v786
        %v971 = vpop.f32.mrf.mxu0
        %v972 = vadd.f32 %v641, %v971
        %v973 = vpop.f32.mrf.mxu0
        %v974 = vadd.f32 %v641, %v973
        %975 = vmatmul.bf16.gmra.mxu0 %v787
        %v976 = vpop.f32.mrf.mxu0
        %v977 = vadd.f32 %v641, %v976
        %v978 = vpop.f32.mrf.mxu0
        %v979 = vadd.f32 %v641, %v978
        %980 = vmatmul.bf16.gmra.mxu0 %v788
        %v981 = vpop.f32.mrf.mxu0
        %v982 = vadd.f32 %v641, %v981
        %v983 = vpop.f32.mrf.mxu0
        %v984 = vadd.f32 %v641, %v983
        %985 = vmatmul.bf16.gmra.mxu0 %v789
        %v986 = vpop.f32.mrf.mxu0
        %v987 = vadd.f32 %v641, %v986
        %v988 = vpop.f32.mrf.mxu0
        %v989 = vadd.f32 %v641, %v988
        %990 = vmatmul.bf16.gmra.mxu0 %v790
        %v991 = vpop.f32.mrf.mxu0
        %v992 = vadd.f32 %v641, %v991
        %v993 = vpop.f32.mrf.mxu0
        %v994 = vadd.f32 %v641, %v993
        %995 = vmatmul.bf16.gmra.mxu0 %v791
        %v996 = vpop.f32.mrf.mxu0
        %v997 = vadd.f32 %v641, %v996
        %v998 = vpop.f32.mrf.mxu0
        %v999 = vadd.f32 %v641, %v998
        %1000 = vmatmul.bf16.gmra.mxu0 %v792
        %v1001 = vpop.f32.mrf.mxu0
        %v1002 = vadd.f32 %v641, %v1001
        %v1003 = vpop.f32.mrf.mxu0
        %v1004 = vadd.f32 %v641, %v1003
        %1005 = vmatmul.bf16.gmra.mxu0 %v793
        %v1006 = vpop.f32.mrf.mxu0
        %v1007 = vadd.f32 %v641, %v1006
        %v1008 = vpop.f32.mrf.mxu0
        %v1009 = vadd.f32 %v641, %v1008
        %1010 = vmatmul.bf16.gmra.mxu0 %v794
        %v1011 = vpop.f32.mrf.mxu0
        %v1012 = vadd.f32 %v641, %v1011
        %v1013 = vpop.f32.mrf.mxu0
        %v1014 = vadd.f32 %v641, %v1013
        %1015 = vmatmul.bf16.gmra.mxu0 %v795
        %v1016 = vpop.f32.mrf.mxu0
        %v1017 = vadd.f32 %v641, %v1016
        %v1018 = vpop.f32.mrf.mxu0
        %v1019 = vadd.f32 %v641, %v1018
        %1020 = vmatmul.bf16.gmra.mxu0 %v796
        %v1021 = vpop.f32.mrf.mxu0
        %v1022 = vadd.f32 %v641, %v1021
        %v1023 = vpop.f32.mrf.mxu0
        %v1024 = vadd.f32 %v641, %v1023
        %1025 = vmatmul.bf16.gmra.mxu0 %v797
        %v1026 = vpop.f32.mrf.mxu0
        %v1027 = vadd.f32 %v641, %v1026
        %v1028 = vpop.f32.mrf.mxu0
        %v1029 = vadd.f32 %v641, %v1028
        %1030 = vmatmul.bf16.gmra.mxu0 %v798
        %v1031 = vpop.f32.mrf.mxu0
        %v1032 = vadd.f32 %v641, %v1031
        %v1033 = vpop.f32.mrf.mxu0
        %v1034 = vadd.f32 %v641, %v1033
        %1035 = vmatmul.bf16.gmra.mxu0 %v799
        %v1036 = vpop.f32.mrf.mxu0
        %v1037 = vadd.f32 %v641, %v1036
        %v1038 = vpop.f32.mrf.mxu0
        %v1039 = vadd.f32 %v641, %v1038
        %1040 = vmatmul.bf16.gmra.mxu0 %v800
        %v1041 = vpop.f32.mrf.mxu0
        %v1042 = vadd.f32 %v641, %v1041
        %v1043 = vpop.f32.mrf.mxu0
        %v1044 = vadd.f32 %v641, %v1043
        %1045 = vmatmul.bf16.gmra.mxu0 %v801
        %v1046 = vpop.f32.mrf.mxu0
        %v1047 = vadd.f32 %v641, %v1046
        %v1048 = vpop.f32.mrf.mxu0
        %v1049 = vadd.f32 %v641, %v1048
        %1050 = vdwg.mxu0
        %v1051 = vmax.f32 %v892, 0.0
        %v1052 = vmax.f32 %v894, 0.0
        %v1053 = vmax.f32 %v897, 0.0
        %v1054 = vmax.f32 %v899, 0.0
        %v1055 = vmax.f32 %v902, 0.0
        %v1056 = vmax.f32 %v904, 0.0
        %v1057 = vmax.f32 %v907, 0.0
        %v1058 = vmax.f32 %v909, 0.0
        %v1059 = vmax.f32 %v912, 0.0
        %v1060 = vmax.f32 %v914, 0.0
        %v1061 = vmax.f32 %v917, 0.0
        %v1062 = vmax.f32 %v919, 0.0
        %v1063 = vmax.f32 %v922, 0.0
        %v1064 = vmax.f32 %v924, 0.0
        %v1065 = vmax.f32 %v927, 0.0
        %v1066 = vmax.f32 %v929, 0.0
        %v1067 = vmax.f32 %v932, 0.0
        %v1068 = vmax.f32 %v934, 0.0
        %v1069 = vmax.f32 %v937, 0.0
        %v1070 = vmax.f32 %v939, 0.0
        %v1071 = vmax.f32 %v942, 0.0
        %v1072 = vmax.f32 %v944, 0.0
        %v1073 = vmax.f32 %v947, 0.0
        %v1074 = vmax.f32 %v949, 0.0
        %v1075 = vmax.f32 %v952, 0.0
        %v1076 = vmax.f32 %v954, 0.0
        %v1077 = vmax.f32 %v957, 0.0
        %v1078 = vmax.f32 %v959, 0.0
        %v1079 = vmax.f32 %v962, 0.0
        %v1080 = vmax.f32 %v964, 0.0
        %v1081 = vmax.f32 %v967, 0.0
        %v1082 = vmax.f32 %v969, 0.0
        %v1083 = vmax.f32 %v972, 0.0
        %v1084 = vmax.f32 %v974, 0.0
        %v1085 = vmax.f32 %v977, 0.0
        %v1086 = vmax.f32 %v979, 0.0
        %v1087 = vmax.f32 %v982, 0.0
        %v1088 = vmax.f32 %v984, 0.0
        %v1089 = vmax.f32 %v987, 0.0
        %v1090 = vmax.f32 %v989, 0.0
        %v1091 = vmax.f32 %v992, 0.0
        %v1092 = vmax.f32 %v994, 0.0
        %v1093 = vmax.f32 %v997, 0.0
        %v1094 = vmax.f32 %v999, 0.0
        %v1095 = vmax.f32 %v1002, 0.0
        %v1096 = vmax.f32 %v1004, 0.0
        %v1097 = vmax.f32 %v1007, 0.0
        %v1098 = vmax.f32 %v1009, 0.0
        %v1099 = vmax.f32 %v1012, 0.0
        %v1100 = vmax.f32 %v1014, 0.0
        %v1101 = vmax.f32 %v1017, 0.0
        %v1102 = vmax.f32 %v1019, 0.0
        %v1103 = vmax.f32 %v1022, 0.0
        %v1104 = vmax.f32 %v1024, 0.0
        %v1105 = vmax.f32 %v1027, 0.0
        %v1106 = vmax.f32 %v1029, 0.0
        %v1107 = vmax.f32 %v1032, 0.0
        %v1108 = vmax.f32 %v1034, 0.0
        %v1109 = vmax.f32 %v1037, 0.0
        %v1110 = vmax.f32 %v1039, 0.0
        %v1111 = vmax.f32 %v1042, 0.0
        %v1112 = vmax.f32 %v1044, 0.0
        %v1113 = vmax.f32 %v1047, 0.0
        %v1114 = vmax.f32 %v1049, 0.0
        %v1115 = vpack.c.bf16 %v1052, %v1051
        %v1116 = vpack.c.bf16 %v1054, %v1053
        %v1117 = vpack.c.bf16 %v1056, %v1055
        %v1118 = vpack.c.bf16 %v1058, %v1057
        %v1119 = vpack.c.bf16 %v1060, %v1059
        %v1120 = vpack.c.bf16 %v1062, %v1061
        %v1121 = vpack.c.bf16 %v1064, %v1063
        %v1122 = vpack.c.bf16 %v1066, %v1065
        %v1123 = vpack.c.bf16 %v1068, %v1067
        %v1124 = vpack.c.bf16 %v1070, %v1069
        %v1125 = vpack.c.bf16 %v1072, %v1071
        %v1126 = vpack.c.bf16 %v1074, %v1073
        %v1127 = vpack.c.bf16 %v1076, %v1075
        %v1128 = vpack.c.bf16 %v1078, %v1077
        %v1129 = vpack.c.bf16 %v1080, %v1079
        %v1130 = vpack.c.bf16 %v1082, %v1081
        %v1131 = vpack.c.bf16 %v1084, %v1083
        %v1132 = vpack.c.bf16 %v1086, %v1085
        %v1133 = vpack.c.bf16 %v1088, %v1087
        %v1134 = vpack.c.bf16 %v1090, %v1089
        %v1135 = vpack.c.bf16 %v1092, %v1091
        %v1136 = vpack.c.bf16 %v1094, %v1093
        %v1137 = vpack.c.bf16 %v1096, %v1095
        %v1138 = vpack.c.bf16 %v1098, %v1097
        %v1139 = vpack.c.bf16 %v1100, %v1099
        %v1140 = vpack.c.bf16 %v1102, %v1101
        %v1141 = vpack.c.bf16 %v1104, %v1103
        %v1142 = vpack.c.bf16 %v1106, %v1105
        %v1143 = vpack.c.bf16 %v1108, %v1107
        %v1144 = vpack.c.bf16 %v1110, %v1109
        %v1145 = vpack.c.bf16 %v1112, %v1111
        %v1146 = vpack.c.bf16 %v1114, %v1113
        %v1147 = vld [vmem:[#allocation9] sm:$0xf]
        %v1148 = vld [vmem:[#allocation9 + $0x4] sm:$0xf]
        %v1149 = vld [vmem:[#allocation9 + $0x8] sm:$0xf]
        %v1150 = vld [vmem:[#allocation9 + $0xc] sm:$0xf]
        %v1151 = vld [vmem:[#allocation9 + $0x10] sm:$0xf]
        %v1152 = vld [vmem:[#allocation9 + $0x14] sm:$0xf]
        %v1153 = vld [vmem:[#allocation9 + $0x18] sm:$0xf]
        %v1154 = vld [vmem:[#allocation9 + $0x1c] sm:$0xf]
        %v1155 = vld [vmem:[#allocation9 + $0x20] sm:$0xf]
        %v1156 = vld [vmem:[#allocation9 + $0x24] sm:$0xf]
        %v1157 = vld [vmem:[#allocation9 + $0x28] sm:$0xf]
        %v1158 = vld [vmem:[#allocation9 + $0x2c] sm:$0xf]
        %v1159 = vld [vmem:[#allocation9 + $0x30] sm:$0xf]
        %v1160 = vld [vmem:[#allocation9 + $0x34] sm:$0xf]
        %v1161 = vld [vmem:[#allocation9 + $0x38] sm:$0xf]
        %v1162 = vld [vmem:[#allocation9 + $0x3c] sm:$0xf]
        %v1163 = vperm.slane %v554, 0
        %v1180 = vunpack.c.l.b16 %v1147
        %v1181 = vunpack.c.l.b16 %v1148
        %v1182 = vunpack.c.l.b16 %v1149
        %v1183 = vunpack.c.l.b16 %v1150
        %v1184 = vunpack.c.l.b16 %v1151
        %v1185 = vunpack.c.l.b16 %v1152
        %v1186 = vunpack.c.l.b16 %v1153
        %v1187 = vunpack.c.l.b16 %v1154
        %v1188 = vunpack.c.l.b16 %v1155
        %v1189 = vunpack.c.l.b16 %v1156
        %v1190 = vunpack.c.l.b16 %v1157
        %v1191 = vunpack.c.l.b16 %v1158
        %v1192 = vunpack.c.l.b16 %v1159
        %v1193 = vunpack.c.l.b16 %v1160
        %v1194 = vunpack.c.l.b16 %v1161
        %v1195 = vunpack.c.l.b16 %v1162
        %v1196 = vpack.c.b16 %v1181, %v1180
        %v1197 = vpack.c.b16 %v1183, %v1182
        %v1198 = vpack.c.b16 %v1185, %v1184
        %v1199 = vpack.c.b16 %v1187, %v1186
        %v1200 = vpack.c.b16 %v1189, %v1188
        %v1201 = vpack.c.b16 %v1191, %v1190
        %v1202 = vpack.c.b16 %v1193, %v1192
        %v1203 = vpack.c.b16 %v1195, %v1194
        %1212 = vmatpush.bf16.msra.mxu0 %v1203
        %1213 = vmatpush.bf16.msra.mxu0 %v1202
        %1214 = vmatpush.bf16.msra.mxu0 %v1201
        %1215 = vmatpush.bf16.msra.mxu0 %v1200
        %1216 = vmatpush.bf16.msra.mxu0 %v1199
        %1217 = vmatpush.bf16.msra.mxu0 %v1198
        %1218 = vmatpush.bf16.msra.mxu0 %v1197
        %1219 = vmatpush.bf16.msra.mxu0 %v1196
        %1220 = vmatmul.bf16.gmra.mxu0 %v1115
        %v1221 = vpop.f32.mrf.mxu0
        %v1222 = vadd.f32 %v1163, %v1221
        %v1223 = vpop.f32.mrf.mxu0
        %v1224 = vadd.f32 %v1163, %v1223
        %1225 = vmatmul.bf16.gmra.mxu0 %v1116
        %v1226 = vpop.f32.mrf.mxu0
        %v1227 = vadd.f32 %v1163, %v1226
        %v1228 = vpop.f32.mrf.mxu0
        %v1229 = vadd.f32 %v1163, %v1228
        %1230 = vmatmul.bf16.gmra.mxu0 %v1117
        %v1231 = vpop.f32.mrf.mxu0
        %v1232 = vadd.f32 %v1163, %v1231
        %v1233 = vpop.f32.mrf.mxu0
        %v1234 = vadd.f32 %v1163, %v1233
        %1235 = vmatmul.bf16.gmra.mxu0 %v1118
        %v1236 = vpop.f32.mrf.mxu0
        %v1237 = vadd.f32 %v1163, %v1236
        %v1238 = vpop.f32.mrf.mxu0
        %v1239 = vadd.f32 %v1163, %v1238
        %1240 = vmatmul.bf16.gmra.mxu0 %v1119
        %v1241 = vpop.f32.mrf.mxu0
        %v1242 = vadd.f32 %v1163, %v1241
        %v1243 = vpop.f32.mrf.mxu0
        %v1244 = vadd.f32 %v1163, %v1243
        %1245 = vmatmul.bf16.gmra.mxu0 %v1120
        %v1246 = vpop.f32.mrf.mxu0
        %v1247 = vadd.f32 %v1163, %v1246
        %v1248 = vpop.f32.mrf.mxu0
        %v1249 = vadd.f32 %v1163, %v1248
        %1250 = vmatmul.bf16.gmra.mxu0 %v1121
        %v1251 = vpop.f32.mrf.mxu0
        %v1252 = vadd.f32 %v1163, %v1251
        %v1253 = vpop.f32.mrf.mxu0
        %v1254 = vadd.f32 %v1163, %v1253
        %1255 = vmatmul.bf16.gmra.mxu0 %v1122
        %v1256 = vpop.f32.mrf.mxu0
        %v1257 = vadd.f32 %v1163, %v1256
        %v1258 = vpop.f32.mrf.mxu0
        %v1259 = vadd.f32 %v1163, %v1258
        %1260 = vmatmul.bf16.gmra.mxu0 %v1123
        %v1261 = vpop.f32.mrf.mxu0
        %v1262 = vadd.f32 %v1163, %v1261
        %v1263 = vpop.f32.mrf.mxu0
        %v1264 = vadd.f32 %v1163, %v1263
        %1265 = vmatmul.bf16.gmra.mxu0 %v1124
        %v1266 = vpop.f32.mrf.mxu0
        %v1267 = vadd.f32 %v1163, %v1266
        %v1268 = vpop.f32.mrf.mxu0
        %v1269 = vadd.f32 %v1163, %v1268
        %1270 = vmatmul.bf16.gmra.mxu0 %v1125
        %v1271 = vpop.f32.mrf.mxu0
        %v1272 = vadd.f32 %v1163, %v1271
        %v1273 = vpop.f32.mrf.mxu0
        %v1274 = vadd.f32 %v1163, %v1273
        %1275 = vmatmul.bf16.gmra.mxu0 %v1126
        %v1276 = vpop.f32.mrf.mxu0
        %v1277 = vadd.f32 %v1163, %v1276
        %v1278 = vpop.f32.mrf.mxu0
        %v1279 = vadd.f32 %v1163, %v1278
        %1280 = vmatmul.bf16.gmra.mxu0 %v1127
        %v1281 = vpop.f32.mrf.mxu0
        %v1282 = vadd.f32 %v1163, %v1281
        %v1283 = vpop.f32.mrf.mxu0
        %v1284 = vadd.f32 %v1163, %v1283
        %1285 = vmatmul.bf16.gmra.mxu0 %v1128
        %v1286 = vpop.f32.mrf.mxu0
        %v1287 = vadd.f32 %v1163, %v1286
        %v1288 = vpop.f32.mrf.mxu0
        %v1289 = vadd.f32 %v1163, %v1288
        %1290 = vmatmul.bf16.gmra.mxu0 %v1129
        %v1291 = vpop.f32.mrf.mxu0
        %v1292 = vadd.f32 %v1163, %v1291
        %v1293 = vpop.f32.mrf.mxu0
        %v1294 = vadd.f32 %v1163, %v1293
        %1295 = vmatmul.bf16.gmra.mxu0 %v1130
        %v1296 = vpop.f32.mrf.mxu0
        %v1297 = vadd.f32 %v1163, %v1296
        %v1298 = vpop.f32.mrf.mxu0
        %v1299 = vadd.f32 %v1163, %v1298
        %1300 = vmatmul.bf16.gmra.mxu0 %v1131
        %v1301 = vpop.f32.mrf.mxu0
        %v1302 = vadd.f32 %v1163, %v1301
        %v1303 = vpop.f32.mrf.mxu0
        %v1304 = vadd.f32 %v1163, %v1303
        %1305 = vmatmul.bf16.gmra.mxu0 %v1132
        %v1306 = vpop.f32.mrf.mxu0
        %v1307 = vadd.f32 %v1163, %v1306
        %v1308 = vpop.f32.mrf.mxu0
        %v1309 = vadd.f32 %v1163, %v1308
        %1310 = vmatmul.bf16.gmra.mxu0 %v1133
        %v1311 = vpop.f32.mrf.mxu0
        %v1312 = vadd.f32 %v1163, %v1311
        %v1313 = vpop.f32.mrf.mxu0
        %v1314 = vadd.f32 %v1163, %v1313
        %1315 = vmatmul.bf16.gmra.mxu0 %v1134
        %v1316 = vpop.f32.mrf.mxu0
        %v1317 = vadd.f32 %v1163, %v1316
        %v1318 = vpop.f32.mrf.mxu0
        %v1319 = vadd.f32 %v1163, %v1318
        %1320 = vmatmul.bf16.gmra.mxu0 %v1135
        %v1321 = vpop.f32.mrf.mxu0
        %v1322 = vadd.f32 %v1163, %v1321
        %v1323 = vpop.f32.mrf.mxu0
        %v1324 = vadd.f32 %v1163, %v1323
        %1325 = vmatmul.bf16.gmra.mxu0 %v1136
        %v1326 = vpop.f32.mrf.mxu0
        %v1327 = vadd.f32 %v1163, %v1326
        %v1328 = vpop.f32.mrf.mxu0
        %v1329 = vadd.f32 %v1163, %v1328
        %1330 = vmatmul.bf16.gmra.mxu0 %v1137
        %v1331 = vpop.f32.mrf.mxu0
        %v1332 = vadd.f32 %v1163, %v1331
        %v1333 = vpop.f32.mrf.mxu0
        %v1334 = vadd.f32 %v1163, %v1333
        %1335 = vmatmul.bf16.gmra.mxu0 %v1138
        %v1336 = vpop.f32.mrf.mxu0
        %v1337 = vadd.f32 %v1163, %v1336
        %v1338 = vpop.f32.mrf.mxu0
        %v1339 = vadd.f32 %v1163, %v1338
        %1340 = vmatmul.bf16.gmra.mxu0 %v1139
        %v1341 = vpop.f32.mrf.mxu0
        %v1342 = vadd.f32 %v1163, %v1341
        %v1343 = vpop.f32.mrf.mxu0
        %v1344 = vadd.f32 %v1163, %v1343
        %1345 = vmatmul.bf16.gmra.mxu0 %v1140
        %v1346 = vpop.f32.mrf.mxu0
        %v1347 = vadd.f32 %v1163, %v1346
        %v1348 = vpop.f32.mrf.mxu0
        %v1349 = vadd.f32 %v1163, %v1348
        %1350 = vmatmul.bf16.gmra.mxu0 %v1141
        %v1351 = vpop.f32.mrf.mxu0
        %v1352 = vadd.f32 %v1163, %v1351
        %v1353 = vpop.f32.mrf.mxu0
        %v1354 = vadd.f32 %v1163, %v1353
        %1355 = vmatmul.bf16.gmra.mxu0 %v1142
        %v1356 = vpop.f32.mrf.mxu0
        %v1357 = vadd.f32 %v1163, %v1356
        %v1358 = vpop.f32.mrf.mxu0
        %v1359 = vadd.f32 %v1163, %v1358
        %1360 = vmatmul.bf16.gmra.mxu0 %v1143
        %v1361 = vpop.f32.mrf.mxu0
        %v1362 = vadd.f32 %v1163, %v1361
        %v1363 = vpop.f32.mrf.mxu0
        %v1364 = vadd.f32 %v1163, %v1363
        %1365 = vmatmul.bf16.gmra.mxu0 %v1144
        %v1366 = vpop.f32.mrf.mxu0
        %v1367 = vadd.f32 %v1163, %v1366
        %v1368 = vpop.f32.mrf.mxu0
        %v1369 = vadd.f32 %v1163, %v1368
        %1370 = vmatmul.bf16.gmra.mxu0 %v1145
        %v1371 = vpop.f32.mrf.mxu0
        %v1372 = vadd.f32 %v1163, %v1371
        %v1373 = vpop.f32.mrf.mxu0
        %v1374 = vadd.f32 %v1163, %v1373
        %1375 = vmatmul.bf16.gmra.mxu0 %v1146
        %v1376 = vpop.f32.mrf.mxu0
        %v1377 = vadd.f32 %v1163, %v1376
        %v1378 = vpop.f32.mrf.mxu0
        %v1379 = vadd.f32 %v1163, %v1378
        %1380 = vdwg.mxu0
        %1381 = vst [vmem:[%s539] sm:$0xff] %v1222
        %1382 = vst [vmem:[%s539 + $0x8] sm:$0xff] %v1224
        %1383 = vst [vmem:[%s539 + $0x10] sm:$0xff] %v1227
        %1384 = vst [vmem:[%s539 + $0x18] sm:$0xff] %v1229
        %1385 = vst [vmem:[%s539 + $0x20] sm:$0xff] %v1232
        %1386 = vst [vmem:[%s539 + $0x28] sm:$0xff] %v1234
        %1387 = vst [vmem:[%s539 + $0x30] sm:$0xff] %v1237
        %1388 = vst [vmem:[%s539 + $0x38] sm:$0xff] %v1239
        %1389 = vst [vmem:[%s539 + $0x40] sm:$0xff] %v1242
        %1390 = vst [vmem:[%s539 + $0x48] sm:$0xff] %v1244
        %1391 = vst [vmem:[%s539 + $0x50] sm:$0xff] %v1247
        %1392 = vst [vmem:[%s539 + $0x58] sm:$0xff] %v1249
        %1393 = vst [vmem:[%s539 + $0x60] sm:$0xff] %v1252
        %1394 = vst [vmem:[%s539 + $0x68] sm:$0xff] %v1254
        %1395 = vst [vmem:[%s539 + $0x70] sm:$0xff] %v1257
        %1396 = vst [vmem:[%s539 + $0x78] sm:$0xff] %v1259
        %1397 = vst [vmem:[%s539 + $0x80] sm:$0xff] %v1262
        %1398 = vst [vmem:[%s539 + $0x88] sm:$0xff] %v1264
        %1399 = vst [vmem:[%s539 + $0x90] sm:$0xff] %v1267
        %1400 = vst [vmem:[%s539 + $0x98] sm:$0xff] %v1269
        %1401 = vst [vmem:[%s539 + $0xa0] sm:$0xff] %v1272
        %1402 = vst [vmem:[%s539 + $0xa8] sm:$0xff] %v1274
        %1403 = vst [vmem:[%s539 + $0xb0] sm:$0xff] %v1277
        %1404 = vst [vmem:[%s539 + $0xb8] sm:$0xff] %v1279
        %1405 = vst [vmem:[%s539 + $0xc0] sm:$0xff] %v1282
        %1406 = vst [vmem:[%s539 + $0xc8] sm:$0xff] %v1284
        %1407 = vst [vmem:[%s539 + $0xd0] sm:$0xff] %v1287
        %1408 = vst [vmem:[%s539 + $0xd8] sm:$0xff] %v1289
        %1409 = vst [vmem:[%s539 + $0xe0] sm:$0xff] %v1292
        %1410 = vst [vmem:[%s539 + $0xe8] sm:$0xff] %v1294
        %1411 = vst [vmem:[%s539 + $0xf0] sm:$0xff] %v1297
        %1412 = vst [vmem:[%s539 + $0xf8] sm:$0xff] %v1299
        %1413 = vst [vmem:[%s539 + $0x100] sm:$0xff] %v1302
        %1414 = vst [vmem:[%s539 + $0x108] sm:$0xff] %v1304
        %1415 = vst [vmem:[%s539 + $0x110] sm:$0xff] %v1307
        %1416 = vst [vmem:[%s539 + $0x118] sm:$0xff] %v1309
        %1417 = vst [vmem:[%s539 + $0x120] sm:$0xff] %v1312
        %1418 = vst [vmem:[%s539 + $0x128] sm:$0xff] %v1314
        %1419 = vst [vmem:[%s539 + $0x130] sm:$0xff] %v1317
        %1420 = vst [vmem:[%s539 + $0x138] sm:$0xff] %v1319
        %1421 = vst [vmem:[%s539 + $0x140] sm:$0xff] %v1322
        %1422 = vst [vmem:[%s539 + $0x148] sm:$0xff] %v1324
        %1423 = vst [vmem:[%s539 + $0x150] sm:$0xff] %v1327
        %1424 = vst [vmem:[%s539 + $0x158] sm:$0xff] %v1329
        %1425 = vst [vmem:[%s539 + $0x160] sm:$0xff] %v1332
        %1426 = vst [vmem:[%s539 + $0x168] sm:$0xff] %v1334
        %1427 = vst [vmem:[%s539 + $0x170] sm:$0xff] %v1337
        %1428 = vst [vmem:[%s539 + $0x178] sm:$0xff] %v1339
        %1429 = vst [vmem:[%s539 + $0x180] sm:$0xff] %v1342
        %1430 = vst [vmem:[%s539 + $0x188] sm:$0xff] %v1344
        %1431 = vst [vmem:[%s539 + $0x190] sm:$0xff] %v1347
        %1432 = vst [vmem:[%s539 + $0x198] sm:$0xff] %v1349
        %1433 = vst [vmem:[%s539 + $0x1a0] sm:$0xff] %v1352
        %1434 = vst [vmem:[%s539 + $0x1a8] sm:$0xff] %v1354
        %1435 = vst [vmem:[%s539 + $0x1b0] sm:$0xff] %v1357
        %1436 = vst [vmem:[%s539 + $0x1b8] sm:$0xff] %v1359
        %1437 = vst [vmem:[%s539 + $0x1c0] sm:$0xff] %v1362
        %1438 = vst [vmem:[%s539 + $0x1c8] sm:$0xff] %v1364
        %1439 = vst [vmem:[%s539 + $0x1d0] sm:$0xff] %v1367
        %1440 = vst [vmem:[%s539 + $0x1d8] sm:$0xff] %v1369
        %1441 = vst [vmem:[%s539 + $0x1e0] sm:$0xff] %v1372
        %1442 = vst [vmem:[%s539 + $0x1e8] sm:$0xff] %v1374
        %1443 = vst [vmem:[%s539 + $0x1f0] sm:$0xff] %v1377
        %1444 = vst [vmem:[%s539 + $0x1f8] sm:$0xff] %v1379
        %v1445 = vadd.f32 %v1222, %v1224
        %v1446 = vadd.f32 %v1445, %v1227
        %v1447 = vadd.f32 %v1446, %v1229
        %v1448 = vadd.f32 %v1447, %v1232
        %v1449 = vadd.f32 %v1448, %v1234
        %v1450 = vadd.f32 %v1449, %v1237
        %v1451 = vadd.f32 %v1450, %v1239
        %v1452 = vrot.slane %v1451, 4
        %v1453 = vadd.f32 %v1451, %v1452
        %v1454 = vrot.slane %v1453, 2
        %v1455 = vadd.f32 %v1453, %v1454
        %v1456 = vrot.slane %v1455, 1
        %v1457 = vadd.f32 %v1455, %v1456
        %v1458 = vadd.f32 %v1242, %v1244
        %v1459 = vadd.f32 %v1458, %v1247
        %v1460 = vadd.f32 %v1459, %v1249
        %v1461 = vadd.f32 %v1460, %v1252
        %v1462 = vadd.f32 %v1461, %v1254
        %v1463 = vadd.f32 %v1462, %v1257
        %v1464 = vadd.f32 %v1463, %v1259
        %v1465 = vrot.slane %v1464, 4
        %v1466 = vadd.f32 %v1464, %v1465
        %v1467 = vrot.slane %v1466, 2
        %v1468 = vadd.f32 %v1466, %v1467
        %v1469 = vrot.slane %v1468, 1
        %v1470 = vadd.f32 %v1468, %v1469
        %v1471 = vadd.f32 %v1262, %v1264
        %v1472 = vadd.f32 %v1471, %v1267
        %v1473 = vadd.f32 %v1472, %v1269
        %v1474 = vadd.f32 %v1473, %v1272
        %v1475 = vadd.f32 %v1474, %v1274
        %v1476 = vadd.f32 %v1475, %v1277
        %v1477 = vadd.f32 %v1476, %v1279
        %v1478 = vrot.slane %v1477, 4
        %v1479 = vadd.f32 %v1477, %v1478
        %v1480 = vrot.slane %v1479, 2
        %v1481 = vadd.f32 %v1479, %v1480
        %v1482 = vrot.slane %v1481, 1
        %v1483 = vadd.f32 %v1481, %v1482
        %v1484 = vadd.f32 %v1282, %v1284
        %v1485 = vadd.f32 %v1484, %v1287
        %v1486 = vadd.f32 %v1485, %v1289
        %v1487 = vadd.f32 %v1486, %v1292
        %v1488 = vadd.f32 %v1487, %v1294
        %v1489 = vadd.f32 %v1488, %v1297
        %v1490 = vadd.f32 %v1489, %v1299
        %v1491 = vrot.slane %v1490, 4
        %v1492 = vadd.f32 %v1490, %v1491
        %v1493 = vrot.slane %v1492, 2
        %v1494 = vadd.f32 %v1492, %v1493
        %v1495 = vrot.slane %v1494, 1
        %v1496 = vadd.f32 %v1494, %v1495
        %v1497 = vadd.f32 %v1302, %v1304
        %v1498 = vadd.f32 %v1497, %v1307
        %v1499 = vadd.f32 %v1498, %v1309
        %v1500 = vadd.f32 %v1499, %v1312
        %v1501 = vadd.f32 %v1500, %v1314
        %v1502 = vadd.f32 %v1501, %v1317
        %v1503 = vadd.f32 %v1502, %v1319
        %v1504 = vrot.slane %v1503, 4
        %v1505 = vadd.f32 %v1503, %v1504
        %v1506 = vrot.slane %v1505, 2
        %v1507 = vadd.f32 %v1505, %v1506
        %v1508 = vrot.slane %v1507, 1
        %v1509 = vadd.f32 %v1507, %v1508
        %v1510 = vadd.f32 %v1322, %v1324
        %v1511 = vadd.f32 %v1510, %v1327
        %v1512 = vadd.f32 %v1511, %v1329
        %v1513 = vadd.f32 %v1512, %v1332
        %v1514 = vadd.f32 %v1513, %v1334
        %v1515 = vadd.f32 %v1514, %v1337
        %v1516 = vadd.f32 %v1515, %v1339
        %v1517 = vrot.slane %v1516, 4
        %v1518 = vadd.f32 %v1516, %v1517
        %v1519 = vrot.slane %v1518, 2
        %v1520 = vadd.f32 %v1518, %v1519
        %v1521 = vrot.slane %v1520, 1
        %v1522 = vadd.f32 %v1520, %v1521
        %v1523 = vadd.f32 %v1342, %v1344
        %v1524 = vadd.f32 %v1523, %v1347
        %v1525 = vadd.f32 %v1524, %v1349
        %v1526 = vadd.f32 %v1525, %v1352
        %v1527 = vadd.f32 %v1526, %v1354
        %v1528 = vadd.f32 %v1527, %v1357
        %v1529 = vadd.f32 %v1528, %v1359
        %v1530 = vrot.slane %v1529, 4
        %v1531 = vadd.f32 %v1529, %v1530
        %v1532 = vrot.slane %v1531, 2
        %v1533 = vadd.f32 %v1531, %v1532
        %v1534 = vrot.slane %v1533, 1
        %v1535 = vadd.f32 %v1533, %v1534
        %v1536 = vadd.f32 %v1362, %v1364
        %v1537 = vadd.f32 %v1536, %v1367
        %v1538 = vadd.f32 %v1537, %v1369
        %v1539 = vadd.f32 %v1538, %v1372
        %v1540 = vadd.f32 %v1539, %v1374
        %v1541 = vadd.f32 %v1540, %v1377
        %v1542 = vadd.f32 %v1541, %v1379
        %v1543 = vrot.slane %v1542, 4
        %v1544 = vadd.f32 %v1542, %v1543
        %v1545 = vrot.slane %v1544, 2
        %v1546 = vadd.f32 %v1544, %v1545
        %v1547 = vrot.slane %v1546, 1
        %v1548 = vadd.f32 %v1546, %v1547
        %v1549 = vrcp.pop 64.0
        %v1550 = vmul.f32 64.0, %v1549
        %v1551 = vsub.f32 1.0, %v1550
        %v1552 = vmul.f32 %v1549, %v1551
        %v1553 = vadd.f32 %v1549, %v1552
        %vm1554 = vweird.f32 %v1549
        %v1555 = vsel %vm1554, %v1549, %v1553
        %v1556 = vmul.f32 %v1457, %v1555
        %v1557 = vmul.f32 %v1470, %v1555
        %v1558 = vmul.f32 %v1483, %v1555
        %v1559 = vmul.f32 %v1496, %v1555
        %v1560 = vmul.f32 %v1509, %v1555
        %v1561 = vmul.f32 %v1522, %v1555
        %v1562 = vmul.f32 %v1535, %v1555
        %v1563 = vmul.f32 %v1548, %v1555
        %v1564 = vpack.c.bf16 %v1556, %v1556
        %v1565 = vpack.c.bf16 %v1557, %v1557
        %v1566 = vpack.c.bf16 %v1558, %v1558
        %v1567 = vpack.c.bf16 %v1559, %v1559
        %v1568 = vpack.c.bf16 %v1560, %v1560
        %v1569 = vpack.c.bf16 %v1561, %v1561
        %v1570 = vpack.c.bf16 %v1562, %v1562
        %v1571 = vpack.c.bf16 %v1563, %v1563
        %v1572 = vld [vmem:[#allocation10] sm:$0xf]
        %v1573 = vld [vmem:[#allocation10 + $0x4] sm:$0xf]
        %v1574 = vld [vmem:[#allocation10 + $0x8] sm:$0xf]
        %v1575 = vld [vmem:[#allocation10 + $0xc] sm:$0xf]
        %v1576 = vld [vmem:[#allocation10 + $0x10] sm:$0xf]
        %v1577 = vld [vmem:[#allocation10 + $0x14] sm:$0xf]
        %v1578 = vld [vmem:[#allocation10 + $0x18] sm:$0xf]
        %v1579 = vld [vmem:[#allocation10 + $0x1c] sm:$0xf]
        %v1580 = vld [vmem:[#allocation10 + $0x20] sm:$0xf]
        %v1581 = vld [vmem:[#allocation10 + $0x24] sm:$0xf]
        %v1582 = vld [vmem:[#allocation10 + $0x28] sm:$0xf]
        %v1583 = vld [vmem:[#allocation10 + $0x2c] sm:$0xf]
        %v1584 = vld [vmem:[#allocation10 + $0x30] sm:$0xf]
        %v1585 = vld [vmem:[#allocation10 + $0x34] sm:$0xf]
        %v1586 = vld [vmem:[#allocation10 + $0x38] sm:$0xf]
        %v1587 = vld [vmem:[#allocation10 + $0x3c] sm:$0xf]
        %v1588 = vperm.slane %v555, 0
        %v1597 = vunpack.c.l.b16 %v1564
        %v1598 = vunpack.c.l.b16 %v1565
        %v1599 = vunpack.c.l.b16 %v1566
        %v1600 = vunpack.c.l.b16 %v1567
        %v1601 = vunpack.c.l.b16 %v1568
        %v1602 = vunpack.c.l.b16 %v1569
        %v1603 = vunpack.c.l.b16 %v1570
        %v1604 = vunpack.c.l.b16 %v1571
        %vm1605 = vcmask 1041409
        %v1606 = vsel %vm1605, %v1598, %v1597
        %vm1607 = vcmask 1042434
        %v1608 = vsel %vm1607, %v1599, %v1606
        %vm1609 = vcmask 1043459
        %v1610 = vsel %vm1609, %v1600, %v1608
        %vm1611 = vcmask 1044484
        %v1612 = vsel %vm1611, %v1601, %v1610
        %vm1613 = vcmask 1045509
        %v1614 = vsel %vm1613, %v1602, %v1612
        %vm1615 = vcmask 1046534
        %v1616 = vsel %vm1615, %v1603, %v1614
        %vm1617 = vcmask 1047559
        %v1618 = vsel %vm1617, %v1604, %v1616
        %v1619 = vpack.c.b16 %v1618, %v1618
        %v1637 = vunpack.c.l.b16 %v1572
        %v1638 = vunpack.c.l.b16 %v1573
        %v1639 = vunpack.c.l.b16 %v1574
        %v1640 = vunpack.c.l.b16 %v1575
        %v1641 = vunpack.c.l.b16 %v1576
        %v1642 = vunpack.c.l.b16 %v1577
        %v1643 = vunpack.c.l.b16 %v1578
        %v1644 = vunpack.c.l.b16 %v1579
        %v1645 = vunpack.c.l.b16 %v1580
        %v1646 = vunpack.c.l.b16 %v1581
        %v1647 = vunpack.c.l.b16 %v1582
        %v1648 = vunpack.c.l.b16 %v1583
        %v1649 = vunpack.c.l.b16 %v1584
        %v1650 = vunpack.c.l.b16 %v1585
        %v1651 = vunpack.c.l.b16 %v1586
        %v1652 = vunpack.c.l.b16 %v1587
        %v1653 = vpack.c.b16 %v1638, %v1637
        %v1654 = vpack.c.b16 %v1640, %v1639
        %v1655 = vpack.c.b16 %v1642, %v1641
        %v1656 = vpack.c.b16 %v1644, %v1643
        %v1657 = vpack.c.b16 %v1646, %v1645
        %v1658 = vpack.c.b16 %v1648, %v1647
        %v1659 = vpack.c.b16 %v1650, %v1649
        %v1660 = vpack.c.b16 %v1652, %v1651
        %1669 = vmatpush.bf16.msra.mxu0 %v1660
        %1670 = vmatpush.bf16.msra.mxu0 %v1659
        %1671 = vmatpush.bf16.msra.mxu0 %v1658
        %1672 = vmatpush.bf16.msra.mxu0 %v1657
        %1673 = vmatpush.bf16.msra.mxu0 %v1656
        %1674 = vmatpush.bf16.msra.mxu0 %v1655
        %1675 = vmatpush.bf16.msra.mxu0 %v1654
        %1676 = vmatpush.bf16.msra.mxu0 %v1653
        %1677 = vmatmul.bf16.gmra.mxu0 %v1619
        %v1678 = vpop.f32.mrf.mxu0
        %v1679 = vadd.f32 %v1588, %v1678
        %v1680 = vpop.f32.mrf.mxu0
        %1681 = vdwg.mxu0
        %1682 = vst [vmem:[%s546] sm:$0xff] %v1679
        %s1683 = smul.u32 %s44, 8
        %s1684 = smul.u32 %s1683, 128
        %s1685 = sld [smem:[#allocation3 + %s1684]]
        %s1686 = scalar_lea.vmem %s539, %s1685 [#allocation17]
        %v1687 = vld [vmem:[%s1686] sm:$0x1]
        %v1688 = vadd.f32 %v1687, 0.0
        %s1689 = sadd.s32 %s1684, 1
        %s1690 = sld [smem:[#allocation3 + %s1689]]
        %s1691 = scalar_lea.vmem %s539, %s1690 [#allocation17]
        %v1692 = vld [vmem:[%s1691] sm:$0x1]
        %v1693 = vadd.f32 %v1688, %v1692
        %s1694 = sadd.s32 %s1684, 2
        %s1695 = sld [smem:[#allocation3 + %s1694]]
        %s1696 = scalar_lea.vmem %s539, %s1695 [#allocation17]
        %v1697 = vld [vmem:[%s1696] sm:$0x1]
        %v1698 = vadd.f32 %v1693, %v1697
        %s1699 = sadd.s32 %s1684, 3
        %s1700 = sld [smem:[#allocation3 + %s1699]]
        %s1701 = scalar_lea.vmem %s539, %s1700 [#allocation17]
        %v1702 = vld [vmem:[%s1701] sm:$0x1]
        %v1703 = vadd.f32 %v1698, %v1702
        %v1704 = vmul.f32 %v1703, 0.25
        %s1705 = sadd.s32 %s1683, 1
        %s1706 = smul.u32 %s1705, 128
        %s1707 = sld [smem:[#allocation3 + %s1706]]
        %s1708 = sadd.s32 %s1707, 64
        %s1709 = scalar_lea.vmem %s539, %s1708 [#allocation17]
        %v1710 = vld [vmem:[%s1709] sm:$0x1]
        %v1711 = vadd.f32 %v1710, 0.0
        %s1712 = sadd.s32 %s1706, 1
        %s1713 = sld [smem:[#allocation3 + %s1712]]
        %s1714 = sadd.s32 %s1713, 64
        %s1715 = scalar_lea.vmem %s539, %s1714 [#allocation17]
        %v1716 = vld [vmem:[%s1715] sm:$0x1]
        %v1717 = vadd.f32 %v1711, %v1716
        %s1718 = sadd.s32 %s1706, 2
        %s1719 = sld [smem:[#allocation3 + %s1718]]
        %s1720 = sadd.s32 %s1719, 64
        %s1721 = scalar_lea.vmem %s539, %s1720 [#allocation17]
        %v1722 = vld [vmem:[%s1721] sm:$0x1]
        %v1723 = vadd.f32 %v1717, %v1722
        %s1724 = sadd.s32 %s1706, 3
        %s1725 = sld [smem:[#allocation3 + %s1724]]
        %s1726 = sadd.s32 %s1725, 64
        %s1727 = scalar_lea.vmem %s539, %s1726 [#allocation17]
        %v1728 = vld [vmem:[%s1727] sm:$0x1]
        %v1729 = vadd.f32 %v1723, %v1728
        %v1730 = vmul.f32 %v1729, 0.25
        %s1731 = sadd.s32 %s1683, 2
        %s1732 = smul.u32 %s1731, 128
        %s1733 = sld [smem:[#allocation3 + %s1732]]
        %s1734 = sadd.s32 %s1733, 128
        %s1735 = scalar_lea.vmem %s539, %s1734 [#allocation17]
        %v1736 = vld [vmem:[%s1735] sm:$0x1]
        %v1737 = vadd.f32 %v1736, 0.0
        %s1738 = sadd.s32 %s1732, 1
        %s1739 = sld [smem:[#allocation3 + %s1738]]
        %s1740 = sadd.s32 %s1739, 128
        %s1741 = scalar_lea.vmem %s539, %s1740 [#allocation17]
        %v1742 = vld [vmem:[%s1741] sm:$0x1]
        %v1743 = vadd.f32 %v1737, %v1742
        %s1744 = sadd.s32 %s1732, 2
        %s1745 = sld [smem:[#allocation3 + %s1744]]
        %s1746 = sadd.s32 %s1745, 128
        %s1747 = scalar_lea.vmem %s539, %s1746 [#allocation17]
        %v1748 = vld [vmem:[%s1747] sm:$0x1]
        %v1749 = vadd.f32 %v1743, %v1748
        %s1750 = sadd.s32 %s1732, 3
        %s1751 = sld [smem:[#allocation3 + %s1750]]
        %s1752 = sadd.s32 %s1751, 128
        %s1753 = scalar_lea.vmem %s539, %s1752 [#allocation17]
        %v1754 = vld [vmem:[%s1753] sm:$0x1]
        %v1755 = vadd.f32 %v1749, %v1754
        %v1756 = vmul.f32 %v1755, 0.25
        %s1757 = sadd.s32 %s1683, 3
        %s1758 = smul.u32 %s1757, 128
        %s1759 = sld [smem:[#allocation3 + %s1758]]
        %s1760 = sadd.s32 %s1759, 192
        %s1761 = scalar_lea.vmem %s539, %s1760 [#allocation17]
        %v1762 = vld [vmem:[%s1761] sm:$0x1]
        %v1763 = vadd.f32 %v1762, 0.0
        %s1764 = sadd.s32 %s1758, 1
        %s1765 = sld [smem:[#allocation3 + %s1764]]
        %s1766 = sadd.s32 %s1765, 192
        %s1767 = scalar_lea.vmem %s539, %s1766 [#allocation17]
        %v1768 = vld [vmem:[%s1767] sm:$0x1]
        %v1769 = vadd.f32 %v1763, %v1768
        %s1770 = sadd.s32 %s1758, 2
        %s1771 = sld [smem:[#allocation3 + %s1770]]
        %s1772 = sadd.s32 %s1771, 192
        %s1773 = scalar_lea.vmem %s539, %s1772 [#allocation17]
        %v1774 = vld [vmem:[%s1773] sm:$0x1]
        %v1775 = vadd.f32 %v1769, %v1774
        %s1776 = sadd.s32 %s1758, 3
        %s1777 = sld [smem:[#allocation3 + %s1776]]
        %s1778 = sadd.s32 %s1777, 192
        %s1779 = scalar_lea.vmem %s539, %s1778 [#allocation17]
        %v1780 = vld [vmem:[%s1779] sm:$0x1]
        %v1781 = vadd.f32 %v1775, %v1780
        %v1782 = vmul.f32 %v1781, 0.25
        %s1783 = sadd.s32 %s1683, 4
        %s1784 = smul.u32 %s1783, 128
        %s1785 = sld [smem:[#allocation3 + %s1784]]
        %s1786 = sadd.s32 %s1785, 256
        %s1787 = scalar_lea.vmem %s539, %s1786 [#allocation17]
        %v1788 = vld [vmem:[%s1787] sm:$0x1]
        %v1789 = vadd.f32 %v1788, 0.0
        %s1790 = sadd.s32 %s1784, 1
        %s1791 = sld [smem:[#allocation3 + %s1790]]
        %s1792 = sadd.s32 %s1791, 256
        %s1793 = scalar_lea.vmem %s539, %s1792 [#allocation17]
        %v1794 = vld [vmem:[%s1793] sm:$0x1]
        %v1795 = vadd.f32 %v1789, %v1794
        %s1796 = sadd.s32 %s1784, 2
        %s1797 = sld [smem:[#allocation3 + %s1796]]
        %s1798 = sadd.s32 %s1797, 256
        %s1799 = scalar_lea.vmem %s539, %s1798 [#allocation17]
        %v1800 = vld [vmem:[%s1799] sm:$0x1]
        %v1801 = vadd.f32 %v1795, %v1800
        %s1802 = sadd.s32 %s1784, 3
        %s1803 = sld [smem:[#allocation3 + %s1802]]
        %s1804 = sadd.s32 %s1803, 256
        %s1805 = scalar_lea.vmem %s539, %s1804 [#allocation17]
        %v1806 = vld [vmem:[%s1805] sm:$0x1]
        %v1807 = vadd.f32 %v1801, %v1806
        %v1808 = vmul.f32 %v1807, 0.25
        %s1809 = sadd.s32 %s1683, 5
        %s1810 = smul.u32 %s1809, 128
        %s1811 = sld [smem:[#allocation3 + %s1810]]
        %s1812 = sadd.s32 %s1811, 320
        %s1813 = scalar_lea.vmem %s539, %s1812 [#allocation17]
        %v1814 = vld [vmem:[%s1813] sm:$0x1]
        %v1815 = vadd.f32 %v1814, 0.0
        %s1816 = sadd.s32 %s1810, 1
        %s1817 = sld [smem:[#allocation3 + %s1816]]
        %s1818 = sadd.s32 %s1817, 320
        %s1819 = scalar_lea.vmem %s539, %s1818 [#allocation17]
        %v1820 = vld [vmem:[%s1819] sm:$0x1]
        %v1821 = vadd.f32 %v1815, %v1820
        %s1822 = sadd.s32 %s1810, 2
        %s1823 = sld [smem:[#allocation3 + %s1822]]
        %s1824 = sadd.s32 %s1823, 320
        %s1825 = scalar_lea.vmem %s539, %s1824 [#allocation17]
        %v1826 = vld [vmem:[%s1825] sm:$0x1]
        %v1827 = vadd.f32 %v1821, %v1826
        %s1828 = sadd.s32 %s1810, 3
        %s1829 = sld [smem:[#allocation3 + %s1828]]
        %s1830 = sadd.s32 %s1829, 320
        %s1831 = scalar_lea.vmem %s539, %s1830 [#allocation17]
        %v1832 = vld [vmem:[%s1831] sm:$0x1]
        %v1833 = vadd.f32 %v1827, %v1832
        %v1834 = vmul.f32 %v1833, 0.25
        %s1835 = sadd.s32 %s1683, 6
        %s1836 = smul.u32 %s1835, 128
        %s1837 = sld [smem:[#allocation3 + %s1836]]
        %s1838 = sadd.s32 %s1837, 384
        %s1839 = scalar_lea.vmem %s539, %s1838 [#allocation17]
        %v1840 = vld [vmem:[%s1839] sm:$0x1]
        %v1841 = vadd.f32 %v1840, 0.0
        %s1842 = sadd.s32 %s1836, 1
        %s1843 = sld [smem:[#allocation3 + %s1842]]
        %s1844 = sadd.s32 %s1843, 384
        %s1845 = scalar_lea.vmem %s539, %s1844 [#allocation17]
        %v1846 = vld [vmem:[%s1845] sm:$0x1]
        %v1847 = vadd.f32 %v1841, %v1846
        %s1848 = sadd.s32 %s1836, 2
        %s1849 = sld [smem:[#allocation3 + %s1848]]
        %s1850 = sadd.s32 %s1849, 384
        %s1851 = scalar_lea.vmem %s539, %s1850 [#allocation17]
        %v1852 = vld [vmem:[%s1851] sm:$0x1]
        %v1853 = vadd.f32 %v1847, %v1852
        %s1854 = sadd.s32 %s1836, 3
        %s1855 = sld [smem:[#allocation3 + %s1854]]
        %s1856 = sadd.s32 %s1855, 384
        %s1857 = scalar_lea.vmem %s539, %s1856 [#allocation17]
        %v1858 = vld [vmem:[%s1857] sm:$0x1]
        %v1859 = vadd.f32 %v1853, %v1858
        %v1860 = vmul.f32 %v1859, 0.25
        %s1861 = sadd.s32 %s1683, 7
        %s1862 = smul.u32 %s1861, 128
        %s1863 = sld [smem:[#allocation3 + %s1862]]
        %s1864 = sadd.s32 %s1863, 448
        %s1865 = scalar_lea.vmem %s539, %s1864 [#allocation17]
        %v1866 = vld [vmem:[%s1865] sm:$0x1]
        %v1867 = vadd.f32 %v1866, 0.0
        %s1868 = sadd.s32 %s1862, 1
        %s1869 = sld [smem:[#allocation3 + %s1868]]
        %s1870 = sadd.s32 %s1869, 448
        %s1871 = scalar_lea.vmem %s539, %s1870 [#allocation17]
        %v1872 = vld [vmem:[%s1871] sm:$0x1]
        %v1873 = vadd.f32 %v1867, %v1872
        %s1874 = sadd.s32 %s1862, 2
        %s1875 = sld [smem:[#allocation3 + %s1874]]
        %s1876 = sadd.s32 %s1875, 448
        %s1877 = scalar_lea.vmem %s539, %s1876 [#allocation17]
        %v1878 = vld [vmem:[%s1877] sm:$0x1]
        %v1879 = vadd.f32 %v1873, %v1878
        %s1880 = sadd.s32 %s1862, 3
        %s1881 = sld [smem:[#allocation3 + %s1880]]
        %s1882 = sadd.s32 %s1881, 448
        %s1883 = scalar_lea.vmem %s539, %s1882 [#allocation17]
        %v1884 = vld [vmem:[%s1883] sm:$0x1]
        %v1885 = vadd.f32 %v1879, %v1884
        %v1886 = vmul.f32 %v1885, 0.25
        %v1888 = vrot.slane %v1730, 7
        %v1891 = vrot.slane %v1756, 6
        %v1894 = vrot.slane %v1782, 5
        %v1897 = vrot.slane %v1808, 4
        %v1900 = vrot.slane %v1834, 3
        %v1903 = vrot.slane %v1860, 2
        %v1906 = vrot.slane %v1886, 1
        %vm1908 = vcmask 1040384
        %v1909 = vsel %vm1908, %v1704, %v1888
        %vm1910 = vcmask 1041408
        %v1911 = vsel %vm1910, %v1909, %v1891
        %vm1912 = vcmask 1042432
        %v1913 = vsel %vm1912, %v1911, %v1894
        %vm1914 = vcmask 1043456
        %v1915 = vsel %vm1914, %v1913, %v1897
        %vm1916 = vcmask 1044480
        %v1917 = vsel %vm1916, %v1915, %v1900
        %vm1918 = vcmask 1045504
        %v1919 = vsel %vm1918, %v1917, %v1903
        %vm1920 = vcmask 1046528
        %v1921 = vsel %vm1920, %v1919, %v1906
        %v1922 = vpack.c.bf16 %v1921, %v1921
        %v1923 = vld [vmem:[%s551] sm:$0xff]
        %v1924 = vpack.c.bf16 %v1923, %v1923
        %v1925 = vld [vmem:[#allocation12] sm:$0xf]
        %v1926 = vld [vmem:[#allocation12 + $0x4] sm:$0xf]
        %v1927 = vld [vmem:[#allocation12 + $0x8] sm:$0xf]
        %v1928 = vld [vmem:[#allocation12 + $0xc] sm:$0xf]
        %v1929 = vld [vmem:[#allocation12 + $0x10] sm:$0xf]
        %v1930 = vld [vmem:[#allocation12 + $0x14] sm:$0xf]
        %v1931 = vld [vmem:[#allocation12 + $0x18] sm:$0xf]
        %v1932 = vld [vmem:[#allocation12 + $0x1c] sm:$0xf]
        %v1933 = vld [vmem:[#allocation12 + $0x20] sm:$0xf]
        %v1934 = vld [vmem:[#allocation12 + $0x24] sm:$0xf]
        %v1935 = vld [vmem:[#allocation12 + $0x28] sm:$0xf]
        %v1936 = vld [vmem:[#allocation12 + $0x2c] sm:$0xf]
        %v1937 = vld [vmem:[#allocation12 + $0x30] sm:$0xf]
        %v1938 = vld [vmem:[#allocation12 + $0x34] sm:$0xf]
        %v1939 = vld [vmem:[#allocation12 + $0x38] sm:$0xf]
        %v1940 = vld [vmem:[#allocation12 + $0x3c] sm:$0xf]
        %v1941 = vld [vmem:[#allocation12 + $0x40] sm:$0xf]
        %v1942 = vld [vmem:[#allocation12 + $0x44] sm:$0xf]
        %v1943 = vld [vmem:[#allocation12 + $0x48] sm:$0xf]
        %v1944 = vld [vmem:[#allocation12 + $0x4c] sm:$0xf]
        %v1945 = vld [vmem:[#allocation12 + $0x50] sm:$0xf]
        %v1946 = vld [vmem:[#allocation12 + $0x54] sm:$0xf]
        %v1947 = vld [vmem:[#allocation12 + $0x58] sm:$0xf]
        %v1948 = vld [vmem:[#allocation12 + $0x5c] sm:$0xf]
        %v1949 = vld [vmem:[#allocation12 + $0x60] sm:$0xf]
        %v1950 = vld [vmem:[#allocation12 + $0x64] sm:$0xf]
        %v1951 = vld [vmem:[#allocation12 + $0x68] sm:$0xf]
        %v1952 = vld [vmem:[#allocation12 + $0x6c] sm:$0xf]
        %v1953 = vld [vmem:[#allocation12 + $0x70] sm:$0xf]
        %v1954 = vld [vmem:[#allocation12 + $0x74] sm:$0xf]
        %v1955 = vld [vmem:[#allocation12 + $0x78] sm:$0xf]
        %v1956 = vld [vmem:[#allocation12 + $0x7c] sm:$0xf]
        %v1957 = vperm.slane %v556, 0
        %v1990 = vunpack.c.l.b16 %v1925
        %v1991 = vunpack.c.l.b16 %v1926
        %v1992 = vunpack.c.l.b16 %v1927
        %v1993 = vunpack.c.l.b16 %v1928
        %v1994 = vunpack.c.l.b16 %v1929
        %v1995 = vunpack.c.l.b16 %v1930
        %v1996 = vunpack.c.l.b16 %v1931
        %v1997 = vunpack.c.l.b16 %v1932
        %v1998 = vunpack.c.l.b16 %v1933
        %v1999 = vunpack.c.l.b16 %v1934
        %v2000 = vunpack.c.l.b16 %v1935
        %v2001 = vunpack.c.l.b16 %v1936
        %v2002 = vunpack.c.l.b16 %v1937
        %v2003 = vunpack.c.l.b16 %v1938
        %v2004 = vunpack.c.l.b16 %v1939
        %v2005 = vunpack.c.l.b16 %v1940
        %v2006 = vunpack.c.l.b16 %v1941
        %v2007 = vunpack.c.l.b16 %v1942
        %v2008 = vunpack.c.l.b16 %v1943
        %v2009 = vunpack.c.l.b16 %v1944
        %v2010 = vunpack.c.l.b16 %v1945
        %v2011 = vunpack.c.l.b16 %v1946
        %v2012 = vunpack.c.l.b16 %v1947
        %v2013 = vunpack.c.l.b16 %v1948
        %v2014 = vunpack.c.l.b16 %v1949
        %v2015 = vunpack.c.l.b16 %v1950
        %v2016 = vunpack.c.l.b16 %v1951
        %v2017 = vunpack.c.l.b16 %v1952
        %v2018 = vunpack.c.l.b16 %v1953
        %v2019 = vunpack.c.l.b16 %v1954
        %v2020 = vunpack.c.l.b16 %v1955
        %v2021 = vunpack.c.l.b16 %v1956
        %v2022 = vpack.c.b16 %v1991, %v1990
        %v2023 = vpack.c.b16 %v1993, %v1992
        %v2024 = vpack.c.b16 %v1995, %v1994
        %v2025 = vpack.c.b16 %v1997, %v1996
        %v2026 = vpack.c.b16 %v1999, %v1998
        %v2027 = vpack.c.b16 %v2001, %v2000
        %v2028 = vpack.c.b16 %v2003, %v2002
        %v2029 = vpack.c.b16 %v2005, %v2004
        %v2030 = vpack.c.b16 %v2007, %v2006
        %v2031 = vpack.c.b16 %v2009, %v2008
        %v2032 = vpack.c.b16 %v2011, %v2010
        %v2033 = vpack.c.b16 %v2013, %v2012
        %v2034 = vpack.c.b16 %v2015, %v2014
        %v2035 = vpack.c.b16 %v2017, %v2016
        %v2036 = vpack.c.b16 %v2019, %v2018
        %v2037 = vpack.c.b16 %v2021, %v2020
        %2054 = vmatpush.bf16.msra.mxu0 %v2029
        %2055 = vmatpush.bf16.msra.mxu0 %v2028
        %2056 = vmatpush.bf16.msra.mxu0 %v2027
        %2057 = vmatpush.bf16.msra.mxu0 %v2026
        %2058 = vmatpush.bf16.msra.mxu0 %v2025
        %2059 = vmatpush.bf16.msra.mxu0 %v2024
        %2060 = vmatpush.bf16.msra.mxu0 %v2023
        %2061 = vmatpush.bf16.msra.mxu0 %v2022
        %2062 = vmatmul.bf16.gmra.mxu0 %v1922
        %v2063 = vpop.f32.mrf.mxu0
        %v2064 = vadd.f32 %v1957, %v2063
        %v2065 = vpop.f32.mrf.mxu0
        %2066 = vdwg.mxu0
        %2067 = vmatpush.bf16.msra.mxu0 %v2037
        %2068 = vmatpush.bf16.msra.mxu0 %v2036
        %2069 = vmatpush.bf16.msra.mxu0 %v2035
        %2070 = vmatpush.bf16.msra.mxu0 %v2034
        %2071 = vmatpush.bf16.msra.mxu0 %v2033
        %2072 = vmatpush.bf16.msra.mxu0 %v2032
        %2073 = vmatpush.bf16.msra.mxu0 %v2031
        %2074 = vmatpush.bf16.msra.mxu0 %v2030
        %2075 = vmatmul.bf16.gmra.mxu0 %v1924
        %v2076 = vpop.f32.mrf.mxu0
        %v2077 = vadd.f32 %v2064, %v2076
        %v2078 = vpop.f32.mrf.mxu0
        %2079 = vdwg.mxu0
        %v2080 = vmax.f32 %v2077, 0.0
        %v2081 = vpack.c.bf16 %v1679, %v1679
        %v2082 = vld [vmem:[#allocation13] sm:$0xf]
        %v2083 = vld [vmem:[#allocation13 + $0x4] sm:$0xf]
        %v2084 = vld [vmem:[#allocation13 + $0x8] sm:$0xf]
        %v2085 = vld [vmem:[#allocation13 + $0xc] sm:$0xf]
        %v2086 = vld [vmem:[#allocation13 + $0x10] sm:$0xf]
        %v2087 = vld [vmem:[#allocation13 + $0x14] sm:$0xf]
        %v2088 = vld [vmem:[#allocation13 + $0x18] sm:$0xf]
        %v2089 = vld [vmem:[#allocation13 + $0x1c] sm:$0xf]
        %v2090 = vld [vmem:[#allocation13 + $0x20] sm:$0xf]
        %v2091 = vld [vmem:[#allocation13 + $0x24] sm:$0xf]
        %v2092 = vld [vmem:[#allocation13 + $0x28] sm:$0xf]
        %v2093 = vld [vmem:[#allocation13 + $0x2c] sm:$0xf]
        %v2094 = vld [vmem:[#allocation13 + $0x30] sm:$0xf]
        %v2095 = vld [vmem:[#allocation13 + $0x34] sm:$0xf]
        %v2096 = vld [vmem:[#allocation13 + $0x38] sm:$0xf]
        %v2097 = vld [vmem:[#allocation13 + $0x3c] sm:$0xf]
        %v2098 = vld [vmem:[#allocation13 + $0x40] sm:$0xf]
        %v2099 = vld [vmem:[#allocation13 + $0x44] sm:$0xf]
        %v2100 = vld [vmem:[#allocation13 + $0x48] sm:$0xf]
        %v2101 = vld [vmem:[#allocation13 + $0x4c] sm:$0xf]
        %v2102 = vld [vmem:[#allocation13 + $0x50] sm:$0xf]
        %v2103 = vld [vmem:[#allocation13 + $0x54] sm:$0xf]
        %v2104 = vld [vmem:[#allocation13 + $0x58] sm:$0xf]
        %v2105 = vld [vmem:[#allocation13 + $0x5c] sm:$0xf]
        %v2106 = vld [vmem:[#allocation13 + $0x60] sm:$0xf]
        %v2107 = vld [vmem:[#allocation13 + $0x64] sm:$0xf]
        %v2108 = vld [vmem:[#allocation13 + $0x68] sm:$0xf]
        %v2109 = vld [vmem:[#allocation13 + $0x6c] sm:$0xf]
        %v2110 = vld [vmem:[#allocation13 + $0x70] sm:$0xf]
        %v2111 = vld [vmem:[#allocation13 + $0x74] sm:$0xf]
        %v2112 = vld [vmem:[#allocation13 + $0x78] sm:$0xf]
        %v2113 = vld [vmem:[#allocation13 + $0x7c] sm:$0xf]
        %v2114 = vperm.slane %v557, 0
        %v2147 = vunpack.c.l.b16 %v2082
        %v2148 = vunpack.c.l.b16 %v2083
        %v2149 = vunpack.c.l.b16 %v2084
        %v2150 = vunpack.c.l.b16 %v2085
        %v2151 = vunpack.c.l.b16 %v2086
        %v2152 = vunpack.c.l.b16 %v2087
        %v2153 = vunpack.c.l.b16 %v2088
        %v2154 = vunpack.c.l.b16 %v2089
        %v2155 = vunpack.c.l.b16 %v2090
        %v2156 = vunpack.c.l.b16 %v2091
        %v2157 = vunpack.c.l.b16 %v2092
        %v2158 = vunpack.c.l.b16 %v2093
        %v2159 = vunpack.c.l.b16 %v2094
        %v2160 = vunpack.c.l.b16 %v2095
        %v2161 = vunpack.c.l.b16 %v2096
        %v2162 = vunpack.c.l.b16 %v2097
        %v2163 = vunpack.c.l.b16 %v2098
        %v2164 = vunpack.c.l.b16 %v2099
        %v2165 = vunpack.c.l.b16 %v2100
        %v2166 = vunpack.c.l.b16 %v2101
        %v2167 = vunpack.c.l.b16 %v2102
        %v2168 = vunpack.c.l.b16 %v2103
        %v2169 = vunpack.c.l.b16 %v2104
        %v2170 = vunpack.c.l.b16 %v2105
        %v2171 = vunpack.c.l.b16 %v2106
        %v2172 = vunpack.c.l.b16 %v2107
        %v2173 = vunpack.c.l.b16 %v2108
        %v2174 = vunpack.c.l.b16 %v2109
        %v2175 = vunpack.c.l.b16 %v2110
        %v2176 = vunpack.c.l.b16 %v2111
        %v2177 = vunpack.c.l.b16 %v2112
        %v2178 = vunpack.c.l.b16 %v2113
        %v2179 = vpack.c.b16 %v2148, %v2147
        %v2180 = vpack.c.b16 %v2150, %v2149
        %v2181 = vpack.c.b16 %v2152, %v2151
        %v2182 = vpack.c.b16 %v2154, %v2153
        %v2183 = vpack.c.b16 %v2156, %v2155
        %v2184 = vpack.c.b16 %v2158, %v2157
        %v2185 = vpack.c.b16 %v2160, %v2159
        %v2186 = vpack.c.b16 %v2162, %v2161
        %v2187 = vpack.c.b16 %v2164, %v2163
        %v2188 = vpack.c.b16 %v2166, %v2165
        %v2189 = vpack.c.b16 %v2168, %v2167
        %v2190 = vpack.c.b16 %v2170, %v2169
        %v2191 = vpack.c.b16 %v2172, %v2171
        %v2192 = vpack.c.b16 %v2174, %v2173
        %v2193 = vpack.c.b16 %v2176, %v2175
        %v2194 = vpack.c.b16 %v2178, %v2177
        %2211 = vmatpush.bf16.msra.mxu0 %v2186
        %2212 = vmatpush.bf16.msra.mxu0 %v2185
        %2213 = vmatpush.bf16.msra.mxu0 %v2184
        %2214 = vmatpush.bf16.msra.mxu0 %v2183
        %2215 = vmatpush.bf16.msra.mxu0 %v2182
        %2216 = vmatpush.bf16.msra.mxu0 %v2181
        %2217 = vmatpush.bf16.msra.mxu0 %v2180
        %2218 = vmatpush.bf16.msra.mxu0 %v2179
        %2219 = vmatmul.bf16.gmra.mxu0 %v2081
        %v2220 = vpop.f32.mrf.mxu0
        %v2221 = vadd.f32 %v2114, %v2220
        %v2222 = vpop.f32.mrf.mxu0
        %2223 = vdwg.mxu0
        %2224 = vmatpush.bf16.msra.mxu0 %v2194
        %2225 = vmatpush.bf16.msra.mxu0 %v2193
        %2226 = vmatpush.bf16.msra.mxu0 %v2192
        %2227 = vmatpush.bf16.msra.mxu0 %v2191
        %2228 = vmatpush.bf16.msra.mxu0 %v2190
        %2229 = vmatpush.bf16.msra.mxu0 %v2189
        %2230 = vmatpush.bf16.msra.mxu0 %v2188
        %2231 = vmatpush.bf16.msra.mxu0 %v2187
        %2232 = vmatmul.bf16.gmra.mxu0 %v1922
        %v2233 = vpop.f32.mrf.mxu0
        %v2234 = vadd.f32 %v2221, %v2233
        %v2235 = vpop.f32.mrf.mxu0
        %2236 = vdwg.mxu0
        %v2237 = vmax.f32 %v2234, 0.0
        %v2238 = vpack.c.bf16 %v2080, %v2080
        %v2239 = vpack.c.bf16 %v2237, %v2237
        %v2240 = vld [vmem:[#allocation15] sm:$0xf]
        %v2241 = vld [vmem:[#allocation15 + $0x4] sm:$0xf]
        %v2242 = vld [vmem:[#allocation15 + $0x8] sm:$0xf]
        %v2243 = vld [vmem:[#allocation15 + $0xc] sm:$0xf]
        %v2244 = vld [vmem:[#allocation15 + $0x10] sm:$0xf]
        %v2245 = vld [vmem:[#allocation15 + $0x14] sm:$0xf]
        %v2246 = vld [vmem:[#allocation15 + $0x18] sm:$0xf]
        %v2247 = vld [vmem:[#allocation15 + $0x1c] sm:$0xf]
        %v2248 = vld [vmem:[#allocation15 + $0x20] sm:$0xf]
        %v2249 = vld [vmem:[#allocation15 + $0x24] sm:$0xf]
        %v2250 = vld [vmem:[#allocation15 + $0x28] sm:$0xf]
        %v2251 = vld [vmem:[#allocation15 + $0x2c] sm:$0xf]
        %v2252 = vld [vmem:[#allocation15 + $0x30] sm:$0xf]
        %v2253 = vld [vmem:[#allocation15 + $0x34] sm:$0xf]
        %v2254 = vld [vmem:[#allocation15 + $0x38] sm:$0xf]
        %v2255 = vld [vmem:[#allocation15 + $0x3c] sm:$0xf]
        %v2256 = vld [vmem:[#allocation15 + $0x40] sm:$0xf]
        %v2257 = vld [vmem:[#allocation15 + $0x44] sm:$0xf]
        %v2258 = vld [vmem:[#allocation15 + $0x48] sm:$0xf]
        %v2259 = vld [vmem:[#allocation15 + $0x4c] sm:$0xf]
        %v2260 = vld [vmem:[#allocation15 + $0x50] sm:$0xf]
        %v2261 = vld [vmem:[#allocation15 + $0x54] sm:$0xf]
        %v2262 = vld [vmem:[#allocation15 + $0x58] sm:$0xf]
        %v2263 = vld [vmem:[#allocation15 + $0x5c] sm:$0xf]
        %v2264 = vld [vmem:[#allocation15 + $0x60] sm:$0xf]
        %v2265 = vld [vmem:[#allocation15 + $0x64] sm:$0xf]
        %v2266 = vld [vmem:[#allocation15 + $0x68] sm:$0xf]
        %v2267 = vld [vmem:[#allocation15 + $0x6c] sm:$0xf]
        %v2268 = vld [vmem:[#allocation15 + $0x70] sm:$0xf]
        %v2269 = vld [vmem:[#allocation15 + $0x74] sm:$0xf]
        %v2270 = vld [vmem:[#allocation15 + $0x78] sm:$0xf]
        %v2271 = vld [vmem:[#allocation15 + $0x7c] sm:$0xf]
        %v2272 = vperm.slane %v558, 0
        %v2305 = vunpack.c.l.b16 %v2240
        %v2306 = vunpack.c.l.b16 %v2241
        %v2307 = vunpack.c.l.b16 %v2242
        %v2308 = vunpack.c.l.b16 %v2243
        %v2309 = vunpack.c.l.b16 %v2244
        %v2310 = vunpack.c.l.b16 %v2245
        %v2311 = vunpack.c.l.b16 %v2246
        %v2312 = vunpack.c.l.b16 %v2247
        %v2313 = vunpack.c.l.b16 %v2248
        %v2314 = vunpack.c.l.b16 %v2249
        %v2315 = vunpack.c.l.b16 %v2250
        %v2316 = vunpack.c.l.b16 %v2251
        %v2317 = vunpack.c.l.b16 %v2252
        %v2318 = vunpack.c.l.b16 %v2253
        %v2319 = vunpack.c.l.b16 %v2254
        %v2320 = vunpack.c.l.b16 %v2255
        %v2321 = vunpack.c.l.b16 %v2256
        %v2322 = vunpack.c.l.b16 %v2257
        %v2323 = vunpack.c.l.b16 %v2258
        %v2324 = vunpack.c.l.b16 %v2259
        %v2325 = vunpack.c.l.b16 %v2260
        %v2326 = vunpack.c.l.b16 %v2261
        %v2327 = vunpack.c.l.b16 %v2262
        %v2328 = vunpack.c.l.b16 %v2263
        %v2329 = vunpack.c.l.b16 %v2264
        %v2330 = vunpack.c.l.b16 %v2265
        %v2331 = vunpack.c.l.b16 %v2266
        %v2332 = vunpack.c.l.b16 %v2267
        %v2333 = vunpack.c.l.b16 %v2268
        %v2334 = vunpack.c.l.b16 %v2269
        %v2335 = vunpack.c.l.b16 %v2270
        %v2336 = vunpack.c.l.b16 %v2271
        %v2337 = vpack.c.b16 %v2306, %v2305
        %v2338 = vpack.c.b16 %v2308, %v2307
        %v2339 = vpack.c.b16 %v2310, %v2309
        %v2340 = vpack.c.b16 %v2312, %v2311
        %v2341 = vpack.c.b16 %v2314, %v2313
        %v2342 = vpack.c.b16 %v2316, %v2315
        %v2343 = vpack.c.b16 %v2318, %v2317
        %v2344 = vpack.c.b16 %v2320, %v2319
        %v2345 = vpack.c.b16 %v2322, %v2321
        %v2346 = vpack.c.b16 %v2324, %v2323
        %v2347 = vpack.c.b16 %v2326, %v2325
        %v2348 = vpack.c.b16 %v2328, %v2327
        %v2349 = vpack.c.b16 %v2330, %v2329
        %v2350 = vpack.c.b16 %v2332, %v2331
        %v2351 = vpack.c.b16 %v2334, %v2333
        %v2352 = vpack.c.b16 %v2336, %v2335
        %2369 = vmatpush.bf16.msra.mxu0 %v2344
        %2370 = vmatpush.bf16.msra.mxu0 %v2343
        %2371 = vmatpush.bf16.msra.mxu0 %v2342
        %2372 = vmatpush.bf16.msra.mxu0 %v2341
        %2373 = vmatpush.bf16.msra.mxu0 %v2340
        %2374 = vmatpush.bf16.msra.mxu0 %v2339
        %2375 = vmatpush.bf16.msra.mxu0 %v2338
        %2376 = vmatpush.bf16.msra.mxu0 %v2337
        %2377 = vmatmul.bf16.gmra.mxu0 %v2238
        %v2378 = vpop.f32.mrf.mxu0
        %v2379 = vadd.f32 %v2272, %v2378
        %v2380 = vpop.f32.mrf.mxu0
        %2381 = vdwg.mxu0
        %2382 = vmatpush.bf16.msra.mxu0 %v2352
        %2383 = vmatpush.bf16.msra.mxu0 %v2351
        %2384 = vmatpush.bf16.msra.mxu0 %v2350
        %2385 = vmatpush.bf16.msra.mxu0 %v2349
        %2386 = vmatpush.bf16.msra.mxu0 %v2348
        %2387 = vmatpush.bf16.msra.mxu0 %v2347
        %2388 = vmatpush.bf16.msra.mxu0 %v2346
        %2389 = vmatpush.bf16.msra.mxu0 %v2345
        %2390 = vmatmul.bf16.gmra.mxu0 %v2239
        %v2391 = vpop.f32.mrf.mxu0
        %v2392 = vadd.f32 %v2379, %v2391
        %v2393 = vpop.f32.mrf.mxu0
        %2394 = vdwg.mxu0
        %v2395 = vmax.f32 %v2392, 0.0
        %v2396 = vperm.slane %v560, 0
        %v2397 = vmul.f32 %v2395, %v2396
        %2398 = vadd.xlane.f32.xlu0 %v2397
        %v2399 = vpop.xlane.xlu0 %2398
        %v2400 = vperm.slane %v559, 0
        %v2401 = vadd.f32 %v2399, %v2400
        %2402 = vst [vmem:[%s532] sm:$0xff] %v2401
        %s2403 = sand.u32 %s251, 1
        %s2404 = scalar_lea.sflag [#allocation6], %s2403
        %s2405 = sand.u32 %s251, 1
        %s2406 = smul.addr %s2405, 8
        %s2407 = scalar_lea.vmem [#allocation16], %s2406
        %s2408 = sand.u32 %s44, 1
        %s2409 = scalar_lea.sflag [#allocation18], %s2408
        %s2410 = sand.u32 %s277, 1
        %s2411 = smul.addr %s2410, 512
        %s2412 = scalar_lea.vmem [#allocation17], %s2411
        %s2413 = sand.u32 %s44, 1
        %s2414 = scalar_lea.sflag [#allocation18], %s2413
        %s2415 = sand.u32 %s303, 1
        %s2416 = smul.addr %s2415, 8
        %s2417 = scalar_lea.vmem [#allocation19], %s2416
        // Predicated region
        $region85: #{tpu_custom_call.1} parent=55 // pred_check
          %p2418 = pneg %p261
        $region86: #{tpu_custom_call.1} parent=55 // pred_check_branch
          %2420 = sbr.rel (%p2418) target = $region88
        $region87: #{tpu_custom_call.1} parent=55 // pred_region
          %2422 = vsyncadd %s2404, 0
          %s2423 = smul.addr %s44, 8
          %s2424 = scalar_lea.hbm %s10, %s2423
          %s2426 = sshll.u32 %s2407, 4
          %s2427 = int_to_ptr.vmem [resolvable:$true] %s2426
          %s2428 = sshll.u32 %s2424, 4
          %s2429 = int_to_ptr.hbm [resolvable:$true] %s2428
          %2431 = dma.vmem_to_hbm [thread:$0]  %s2427, 128, %s2429, %s2404
        $region88: #{tpu_custom_call.1} parent=55 // pred_fallthru
          _
        // Predicated region
        $region89: #{tpu_custom_call.1} parent=55 // pred_check
          %p2432 = pneg %p287
        $region90: #{tpu_custom_call.1} parent=55 // pred_check_branch
          %2434 = sbr.rel (%p2432) target = $region92
        $region91: #{tpu_custom_call.1} parent=55 // pred_region
          %s2435 = smul.u32 8, %s44
          %2437 = vsyncadd %s2409, 0
          %s2438 = smul.addr %s2435, 8
          %s2439 = smul.addr %s2438, 8
          %s2440 = scalar_lea.hbm %s11, %s2439
          %s2441 = sshll.u32 %s2412, 4
          %s2442 = int_to_ptr.vmem [resolvable:$true] %s2441
          %s2443 = sshll.u32 %s2440, 4
          %s2444 = int_to_ptr.hbm [resolvable:$true] %s2443
          %2449 = dma.vmem_to_hbm [thread:$0]  %s2442, 8192, %s2444, %s2409, 128, 128, 8
        $region92: #{tpu_custom_call.1} parent=55 // pred_fallthru
          _
        // Predicated region
        $region93: #{tpu_custom_call.1} parent=55 // pred_check
          %p2450 = pneg %p313
        $region94: #{tpu_custom_call.1} parent=55 // pred_check_branch
          %2452 = sbr.rel (%p2450) target = $region96
        $region95: #{tpu_custom_call.1} parent=55 // pred_region
          %2454 = vsyncadd %s2414, 0
          %s2455 = smul.addr %s44, 8
          %s2456 = scalar_lea.hbm %s12, %s2455
          %s2458 = sshll.u32 %s2417, 4
          %s2459 = int_to_ptr.vmem [resolvable:$true] %s2458
          %s2460 = sshll.u32 %s2456, 4
          %s2461 = int_to_ptr.hbm [resolvable:$true] %s2460
          %2463 = dma.vmem_to_hbm [thread:$0]  %s2459, 128, %s2461, %s2414
        $region96: #{tpu_custom_call.1} parent=55 // pred_fallthru
          _
      $region56: #{tpu_custom_call.1} parent=5 // pred_fallthru
        _
      %p2464 = scmp.le.s32.totalorder 2, %s39
      // Predicated region
      $region97: #{tpu_custom_call.1} parent=5 // pred_check
        %p2465 = pneg %p2464
      $region98: #{tpu_custom_call.1} parent=5 // pred_check_branch
        %2467 = sbr.rel (%p2465) target = $region100
      $region99: #{tpu_custom_call.1} parent=5 // pred_region
        %s2468 = ssub.s32 %s39, 2
        // Predicated region
        $region101: #{tpu_custom_call.1} parent=99 // pred_check
          %p2469 = pneg %p267
        $region102: #{tpu_custom_call.1} parent=99 // pred_check_branch
          %2471 = sbr.rel (%p2469) target = $region104
        $region103: #{tpu_custom_call.1} parent=99 // pred_region
          %s2472 = sand.u32 %s252, 1
          %s2473 = scalar_lea.sflag [#allocation6], %s2472
          %s2474 = sand.u32 %s252, 1
          %s2475 = smul.addr %s2474, 8
          %s2476 = scalar_lea.vmem [#allocation16], %s2475
          %2478 = dma.done %s2473, 128
        $region104: #{tpu_custom_call.1} parent=99 // pred_fallthru
          _
        // Predicated region
        $region105: #{tpu_custom_call.1} parent=99 // pred_check
          %p2479 = pneg %p293
        $region106: #{tpu_custom_call.1} parent=99 // pred_check_branch
          %2481 = sbr.rel (%p2479) target = $region108
        $region107: #{tpu_custom_call.1} parent=99 // pred_region
          %s2482 = sand.u32 %s45, 1
          %s2483 = scalar_lea.sflag [#allocation18], %s2482
          %s2484 = sand.u32 %s278, 1
          %s2485 = smul.addr %s2484, 512
          %s2486 = scalar_lea.vmem [#allocation17], %s2485
          %2488 = dma.done %s2483, 8192
        $region108: #{tpu_custom_call.1} parent=99 // pred_fallthru
          _
        // Predicated region
        $region109: #{tpu_custom_call.1} parent=99 // pred_check
          %p2489 = pneg %p319
        $region110: #{tpu_custom_call.1} parent=99 // pred_check_branch
          %2491 = sbr.rel (%p2489) target = $region112
        $region111: #{tpu_custom_call.1} parent=99 // pred_region
          %s2492 = sand.u32 %s45, 1
          %s2493 = scalar_lea.sflag [#allocation18], %s2492
          %s2494 = sand.u32 %s304, 1
          %s2495 = smul.addr %s2494, 8
          %s2496 = scalar_lea.vmem [#allocation19], %s2495
          %2498 = dma.done %s2493, 128
        $region112: #{tpu_custom_call.1} parent=99 // pred_fallthru
          _
      $region100: #{tpu_custom_call.1} parent=5 // pred_fallthru
        _
    $region6: #{tpu_custom_call.1} parent=1 // loop_footer
      %s43 = sadd.s32 1, %s39
    $region7: #{tpu_custom_call.1} parent=1 // loop_footer_branch
      %38 = sbr.rel target = $region3
    $region8: #{tpu_custom_call.1} parent=1 // loop_exit
      _
    %2499 = vsyncpa [#allocation5], 1
    %s2500 = scalar_lea.sflag [#allocation5], 1
    %2501 = vsyncpa %s2500, 1
    %2502 = vsyncpa [#allocation8], 1
    %2503 = vsyncpa [#allocation11], 1
    %2504 = vsyncpa [#allocation14], 1
    %2505 = vsyncpa [#allocation6], 1
    %s2506 = scalar_lea.sflag [#allocation6], 1
    %2507 = vsyncpa %s2506, 1
    %2508 = vsyncpa [#allocation18], 1
    %s2509 = scalar_lea.sflag [#allocation18], 1
    %2510 = vsyncpa %s2509, 1

</llo_original>
